<compile_context>
chip_gen: v7x
topology: tpu7x:2x2x1
jax: 0.10.0
libtpu: 0.0.40
codegen_flags: <defaults>
</compile_context>

<pallas_src>
import functools

import jax
import jax.numpy as jnp
from jax.experimental import pallas as pl
from jax.experimental.pallas import tpu as pltpu


def _round_up(x, m):
    return (x + m - 1) // m * m


def _choose_token_tile(L, B, tile_n):
    """Pick (tn, l_pad); prefers tiles that divide L exactly (no ragged copies)."""
    target = max(128, (tile_n // 128) * 128)
    if L <= target:
        tn, l_pad = L, L                        # single resident tile (full L)
    else:
        tn = 0
        for d in range(target, 127, -128):      # largest 128-multiple divisor of L
            if L % d == 0:
                tn = d
                break
        if tn:
            l_pad = L
        else:                                   # rare: no good divisor -> pad L
            tn = min(target, 1024)
            l_pad = _round_up(L, tn)
    # Keep >= 2 grid steps when possible so both v7x TensorCores get work.
    if B == 1 and l_pad == tn and tn >= 256 and (tn // 2) % 128 == 0:
        tn //= 2
    return tn, l_pad


def _patch_embed_kernel(x_ref, w_ref, b_ref, *rest, use_norm: bool, eps: float):
    # x_ref: (K, TN) tokens   w_ref: (E, K)   b_ref: (E, 1)
    # rest = (gamma_ref, beta_ref, o_ref) if use_norm else (o_ref,)
    # o_ref: (E, TN) -- written straight into the (B, E, L) output layout.
    o_ref = rest[-1]
    acc = jnp.dot(w_ref[...], x_ref[...], preferred_element_type=jnp.float32)
    acc = acc + b_ref[...].astype(jnp.float32)
    if use_norm:
        g_ref, beta_ref = rest[0], rest[1]
        e = acc.shape[0]
        s1 = jnp.sum(acc, axis=0, keepdims=True)            # (1, TN)
        s2 = jnp.sum(acc * acc, axis=0, keepdims=True)
        mean = s1 * (1.0 / e)
        var = jnp.maximum(s2 * (1.0 / e) - mean * mean, 0.0)  # clamp cancellation
        acc = (acc - mean) * jax.lax.rsqrt(var + eps)
        acc = acc * g_ref[...].astype(jnp.float32) + beta_ref[...].astype(jnp.float32)
    o_ref[...] = acc.astype(o_ref.dtype)


def patch_embed3d(x, weight, bias, gamma=None, beta=None, *,
                  patch_size=(2, 4, 4), use_norm=False, eps=1e-5,
                  compute_dtype=jnp.bfloat16, out_dtype=None, tile_n=4096):
    """x: (B, C, D, H, W).  weight: (E, C, pd, ph, pw).  bias/gamma/beta: (E,)."""
    if use_norm and (gamma is None or beta is None):
        raise ValueError("use_norm=True requires gamma and beta")

    B, C, D, H, W = x.shape
    pd, ph, pw = patch_size
    E = weight.shape[0]
    out_dtype = x.dtype if out_dtype is None else out_dtype

    # Same padding as the PyTorch forward (zero-pad the ends of W, H, D).
    pad_d, pad_h, pad_w = (-D) % pd, (-H) % ph, (-W) % pw
    if pad_d or pad_h or pad_w:
        x = jnp.pad(x, ((0, 0), (0, 0), (0, pad_d), (0, pad_h), (0, pad_w)))
    D2, H2, W2 = D + pad_d, H + pad_h, W + pad_w
    Dp, Hp, Wp = D2 // pd, H2 // ph, W2 // pw
    L = Dp * Hp * Wp
    K = C * pd * ph * pw

    # K-major im2col: (B, K, L), K ordered (C, pd, ph, pw) to match the Conv3d
    # weight (E, C, pd, ph, pw).  The pad + transpose + cast below should fuse
    # into one XLA pass written directly in compute_dtype.
    x8 = x.reshape(B, C, Dp, pd, Hp, ph, Wp, pw)
    tokens = x8.transpose(0, 1, 3, 5, 7, 2, 4, 6).reshape(B, K, L)
    tokens = tokens.astype(compute_dtype)

    tn, l_pad = _choose_token_tile(L, B, tile_n)
    if l_pad != L:  # rare fallback: costs one extra pass over tokens + output
        tokens = jnp.pad(tokens, ((0, 0), (0, 0), (0, l_pad - L)))
    n_l = l_pad // tn
    grid = (B, n_l)

    w2d = weight.reshape(E, K).astype(compute_dtype)        # (E, K), resident
    b2d = bias.reshape(E, 1).astype(jnp.float32)

    cost = pl.CostEstimate(
        flops=2 * B * l_pad * K * E,
        transcendentals=(B * l_pad if use_norm else 0),
        bytes_accessed=(tokens.size * tokens.dtype.itemsize
                        + w2d.size * w2d.dtype.itemsize
                        + B * E * l_pad * jnp.dtype(out_dtype).itemsize))

    kernel = functools.partial(_patch_embed_kernel, use_norm=use_norm, eps=eps)

    def _run(buffer_resident):
        def resident_spec(shape):
            if buffer_resident:
                # These blocks never change across the grid: one buffer is enough.
                return pl.BlockSpec(shape, lambda b, j: (0, 0),
                                    pipeline_mode=pl.Buffered(1))
            return pl.BlockSpec(shape, lambda b, j: (0, 0))

        in_specs = [pl.BlockSpec((None, K, tn), lambda b, j: (b, 0, j)),
                    resident_spec((E, K)),
                    resident_spec((E, 1))]
        call_args = [tokens, w2d, b2d]
        if use_norm:
            in_specs += [resident_spec((E, 1)), resident_spec((E, 1))]
            call_args += [gamma.reshape(E, 1).astype(jnp.float32),
                          beta.reshape(E, 1).astype(jnp.float32)]

        return pl.pallas_call(
            kernel,
            out_shape=jax.ShapeDtypeStruct((B, E, l_pad), out_dtype),
            grid=grid,
            in_specs=in_specs,
            out_specs=pl.BlockSpec((None, E, tn), lambda b, j: (b, 0, j)),
            compiler_params=pltpu.CompilerParams(
                dimension_semantics=("parallel", "parallel")),
            cost_estimate=cost,
        )(*call_args)

    try:
        out = _run(buffer_resident=True)
    except Exception:
        # Fallback for JAX versions without BlockSpec pipeline_mode / pl.Buffered.
        out = _run(buffer_resident=False)

    if l_pad != L:
        out = out[:, :, :L]
    return out.reshape(B, E, Dp, Hp, Wp)    # free reshape (contiguous split)


def _reference(x, weight, bias, gamma, beta, *, patch_size, use_norm, eps=1e-5):
    """Pure-JAX reference mirroring the PyTorch forward (conv3d k==stride)."""
    pd, ph, pw = patch_size
    B, C, D, H, W = x.shape
    x = jnp.pad(x, ((0, 0), (0, 0),
                    (0, (-D) % pd), (0, (-H) % ph), (0, (-W) % pw)))
    y = jax.lax.conv_general_dilated(
        x, weight, window_strides=patch_size, padding="VALID",
        dimension_numbers=("NCDHW", "OIDHW", "NCDHW"))
    y = y + bias.reshape(1, -1, 1, 1, 1)
    if use_norm:
        B2, E, Dp, Hp, Wp = y.shape
        t = y.reshape(B2, E, -1).transpose(0, 2, 1)          # (B, L, E)
        mean = jnp.mean(t, axis=-1, keepdims=True)
        var = jnp.mean((t - mean) ** 2, axis=-1, keepdims=True)
        t = (t - mean) * jax.lax.rsqrt(var + eps)
        t = t * gamma + beta
        y = t.transpose(0, 2, 1).reshape(B2, E, Dp, Hp, Wp)
    return y


if __name__ == "__main__":
    patch_size = (2, 4, 4)
    C, embed_dim = 3, 96

    key = jax.random.PRNGKey(0)
    kx, kw, kb, kx2 = jax.random.split(key, 4)
    fan_in = C * patch_size[0] * patch_size[1] * patch_size[2]
    weight = jax.random.normal(kw, (embed_dim, C) + patch_size,
                               dtype=jnp.float32) * (fan_in ** -0.5)
    bias = jax.random.normal(kb, (embed_dim,), dtype=jnp.float32) * 0.01
    gamma = jnp.ones((embed_dim,), dtype=jnp.float32)   # LayerNorm init
    beta = jnp.zeros((embed_dim,), dtype=jnp.float32)

    # Case 1: ragged spatial dims (exercises the module's zero padding);
    # L = 3*4*4 = 48 -> single resident token tile.
    B, D, H, W = 2, 5, 14, 14
    x = jax.random.normal(kx, (B, C, D, H, W), dtype=jnp.float32)

    ref_norm = _reference(x, weight, bias, gamma, beta,
                          patch_size=patch_size, use_norm=True)
    ref_plain = _reference(x, weight, bias, gamma, beta,
                           patch_size=patch_size, use_norm=False)

    # f32 MXU feed + f32 output + LayerNorm: tight check.
    out_f32 = patch_embed3d(x, weight, bias, gamma, beta, patch_size=patch_size,
                            use_norm=True, compute_dtype=jnp.float32)
    out_f32 = jax.block_until_ready(out_f32)
    assert out_f32.shape == ref_norm.shape == (B, embed_dim, 3, 4, 4)
    assert jnp.allclose(out_f32, ref_norm, atol=2e-4, rtol=2e-4)

    # Default bf16 MXU feed (f32 accumulate) + bf16 output: looser tolerance.
    out_bf16 = patch_embed3d(x, weight, bias, gamma, beta, patch_size=patch_size,
                             use_norm=True, out_dtype=jnp.bfloat16)
    out_bf16 = jax.block_until_ready(out_bf16)
    assert out_bf16.dtype == jnp.bfloat16
    assert jnp.allclose(out_bf16.astype(jnp.float32), ref_norm,
                        atol=7.5e-2, rtol=7.5e-2)

    # norm_layer=None branch: gamma/beta never enter the kernel.
    out_plain = patch_embed3d(x, weight, bias, patch_size=patch_size,
                              use_norm=False, compute_dtype=jnp.float32)
    out_plain = jax.block_until_ready(out_plain)
    assert jnp.allclose(out_plain, ref_plain, atol=2e-4, rtol=2e-4)

    # Case 2: L = 2*8*16 = 256 with tile_n=128 -> multi-tile grid (B=2, 2 L-tiles),
    # exercising the divisor-based exact tiling (no ragged pad/slice).
    B2, D2, H2, W2 = 2, 4, 32, 64
    x2 = jax.random.normal(kx2, (B2, C, D2, H2, W2), dtype=jnp.float32)
    ref2 = _reference(x2, weight, bias, gamma, beta,
                      patch_size=patch_size, use_norm=True)
    out2 = patch_embed3d(x2, weight, bias, gamma, beta, patch_size=patch_size,
                         use_norm=True, compute_dtype=jnp.float32, tile_n=128)
    out2 = jax.block_until_ready(out2)
    assert out2.shape == ref2.shape == (B2, embed_dim, 2, 8, 16)
    assert jnp.allclose(out2, ref2, atol=2e-4, rtol=2e-4)

    print("KERNEL_OK")
</pallas_src>

<mosaic_0001>
module attributes {stable_mosaic.version = 11 : i64} {
  func.func @_patch_embed_kernel(%arg0: i32, %arg1: i32, %arg2: memref<1x96x48xf32, #tpu.memory_space<vmem>>, %arg3: memref<96x96xf32, #tpu.memory_space<vmem>>, %arg4: memref<96x1xf32, #tpu.memory_space<vmem>>, %arg5: memref<96x1xf32, #tpu.memory_space<vmem>>, %arg6: memref<96x1xf32, #tpu.memory_space<vmem>>, %arg7: memref<1x96x48xf32, #tpu.memory_space<vmem>>) attributes {dimension_semantics = [#tpu.dimension_semantics<parallel>, #tpu.dimension_semantics<parallel>], iteration_bounds = array<i64: 2, 1>, scalar_prefetch = 0 : i64, scratch_operands = 0 : i64, tpu.core_type = #tpu.core_type<tc>, window_params = [{transform_indices = @transform_0, window_bounds = array<i64: 1, 96, 48>}, {pipeline_mode = #tpu.pipeline_mode<synchronous>, transform_indices = @transform_1, window_bounds = array<i64: 96, 96>}, {pipeline_mode = #tpu.pipeline_mode<synchronous>, transform_indices = @transform_2, window_bounds = array<i64: 96, 1>}, {pipeline_mode = #tpu.pipeline_mode<synchronous>, transform_indices = @transform_3, window_bounds = array<i64: 96, 1>}, {pipeline_mode = #tpu.pipeline_mode<synchronous>, transform_indices = @transform_4, window_bounds = array<i64: 96, 1>}, {transform_indices = @transform_5, window_bounds = array<i64: 1, 96, 48>}]} {
    %c0 = arith.constant 0 : index
    %c0_0 = arith.constant 0 : index
    %0 = vector.load %arg3[%c0, %c0_0] : memref<96x96xf32, #tpu.memory_space<vmem>>, vector<96x96xf32>
    %c0_1 = arith.constant 0 : index
    %c0_2 = arith.constant 0 : index
    %c0_3 = arith.constant 0 : index
    %1 = vector.load %arg2[%c0_1, %c0_2, %c0_3] : memref<1x96x48xf32, #tpu.memory_space<vmem>>, vector<1x96x48xf32>
    %2 = vector.shape_cast %1 : vector<1x96x48xf32> to vector<96x48xf32>
    %cst = arith.constant dense<0.000000e+00> : vector<96x48xf32>
    %3 = tpu.matmul %0, %2, %cst {dimension_numbers = #tpu.dot_dimension_numbers<[1], [0], [0], [1], [0, 0, 1, 1], [], []>} : vector<96x96xf32>, vector<96x48xf32>, vector<96x48xf32> -> vector<96x48xf32>
    %c0_4 = arith.constant 0 : index
    %c0_5 = arith.constant 0 : index
    %4 = vector.load %arg4[%c0_4, %c0_5] : memref<96x1xf32, #tpu.memory_space<vmem>>, vector<96x1xf32>
    %5 = vector.broadcast %4 : vector<96x1xf32> to vector<96x48xf32>
    %6 = arith.addf %3, %5 : vector<96x48xf32>
    %cst_6 = arith.constant dense<0.000000e+00> : vector<48xf32>
    %7 = vector.multi_reduction <add>, %6, %cst_6 [0] : vector<96x48xf32> to vector<48xf32>
    %8 = vector.shape_cast %7 : vector<48xf32> to vector<1x48xf32>
    %9 = arith.mulf %6, %6 : vector<96x48xf32>
    %cst_7 = arith.constant dense<0.000000e+00> : vector<48xf32>
    %10 = vector.multi_reduction <add>, %9, %cst_7 [0] : vector<96x48xf32> to vector<48xf32>
    %11 = vector.shape_cast %10 : vector<48xf32> to vector<1x48xf32>
    %cst_8 = arith.constant 0.010416667 : f32
    %12 = vector.broadcast %cst_8 : f32 to vector<1x48xf32>
    %13 = arith.mulf %8, %12 : vector<1x48xf32>
    %cst_9 = arith.constant 0.010416667 : f32
    %14 = vector.broadcast %cst_9 : f32 to vector<1x48xf32>
    %15 = arith.mulf %11, %14 : vector<1x48xf32>
    %16 = arith.mulf %13, %13 : vector<1x48xf32>
    %17 = arith.subf %15, %16 : vector<1x48xf32>
    %cst_10 = arith.constant 0.000000e+00 : f32
    %18 = vector.broadcast %cst_10 : f32 to vector<1x48xf32>
    %19 = arith.maximumf %17, %18 : vector<1x48xf32>
    %20 = vector.broadcast %13 : vector<1x48xf32> to vector<96x48xf32>
    %21 = arith.subf %6, %20 : vector<96x48xf32>
    %cst_11 = arith.constant 9.99999974E-6 : f32
    %22 = vector.broadcast %cst_11 : f32 to vector<1x48xf32>
    %23 = arith.addf %19, %22 : vector<1x48xf32>
    %24 = math.rsqrt %23 : vector<1x48xf32>
    %25 = vector.broadcast %24 : vector<1x48xf32> to vector<96x48xf32>
    %26 = arith.mulf %21, %25 : vector<96x48xf32>
    %c0_12 = arith.constant 0 : index
    %c0_13 = arith.constant 0 : index
    %27 = vector.load %arg5[%c0_12, %c0_13] : memref<96x1xf32, #tpu.memory_space<vmem>>, vector<96x1xf32>
    %28 = vector.broadcast %27 : vector<96x1xf32> to vector<96x48xf32>
    %29 = arith.mulf %26, %28 : vector<96x48xf32>
    %c0_14 = arith.constant 0 : index
    %c0_15 = arith.constant 0 : index
    %30 = vector.load %arg6[%c0_14, %c0_15] : memref<96x1xf32, #tpu.memory_space<vmem>>, vector<96x1xf32>
    %31 = vector.broadcast %30 : vector<96x1xf32> to vector<96x48xf32>
    %32 = arith.addf %29, %31 : vector<96x48xf32>
    %c0_16 = arith.constant 0 : index
    %c0_17 = arith.constant 0 : index
    %c0_18 = arith.constant 0 : index
    %33 = vector.load %arg7[%c0_16, %c0_17, %c0_18] : memref<1x96x48xf32, #tpu.memory_space<vmem>>, vector<1x96x48xf32>
    %34 = vector.shape_cast %33 : vector<1x96x48xf32> to vector<96x48xf32>
    %35 = vector.shape_cast %32 : vector<96x48xf32> to vector<1x96x48xf32>
    tpu.vector_store %arg7[%c0_16, %c0_17, %c0_18], %35 {strides = array<i32>} : memref<1x96x48xf32, #tpu.memory_space<vmem>>, vector<1x96x48xf32>,
    return
  }
  func.func @transform_0(%arg0: i32, %arg1: i32) -> (i32, i32, i32) {
    %c0_i32 = arith.constant 0 : i32
    %c0_i32_0 = arith.constant 0 : i32
    return %arg0, %c0_i32, %arg1 : i32, i32, i32
  }
  func.func @transform_1(%arg0: i32, %arg1: i32) -> (i32, i32) {
    %c0_i32 = arith.constant 0 : i32
    %c0_i32_0 = arith.constant 0 : i32
    %c0_i32_1 = arith.constant 0 : i32
    return %c0_i32, %c0_i32_0 : i32, i32
  }
  func.func @transform_2(%arg0: i32, %arg1: i32) -> (i32, i32) {
    %c0_i32 = arith.constant 0 : i32
    %c0_i32_0 = arith.constant 0 : i32
    %c0_i32_1 = arith.constant 0 : i32
    return %c0_i32, %c0_i32_0 : i32, i32
  }
  func.func @transform_3(%arg0: i32, %arg1: i32) -> (i32, i32) {
    %c0_i32 = arith.constant 0 : i32
    %c0_i32_0 = arith.constant 0 : i32
    %c0_i32_1 = arith.constant 0 : i32
    return %c0_i32, %c0_i32_0 : i32, i32
  }
  func.func @transform_4(%arg0: i32, %arg1: i32) -> (i32, i32) {
    %c0_i32 = arith.constant 0 : i32
    %c0_i32_0 = arith.constant 0 : i32
    %c0_i32_1 = arith.constant 0 : i32
    return %c0_i32, %c0_i32_0 : i32, i32
  }
  func.func @transform_5(%arg0: i32, %arg1: i32) -> (i32, i32, i32) {
    %c0_i32 = arith.constant 0 : i32
    %c0_i32_0 = arith.constant 0 : i32
    return %arg0, %c0_i32, %arg1 : i32, i32, i32
  }
}

module attributes {stable_mosaic.version = 11 : i64} {
  func.func @_patch_embed_kernel(%arg0: i32, %arg1: i32, %arg2: memref<1x96x48xf32, #tpu.memory_space<vmem>>, %arg3: memref<96x96xf32, #tpu.memory_space<vmem>>, %arg4: memref<96x1xf32, #tpu.memory_space<vmem>>, %arg5: memref<96x1xf32, #tpu.memory_space<vmem>>, %arg6: memref<96x1xf32, #tpu.memory_space<vmem>>, %arg7: memref<1x96x48xf32, #tpu.memory_space<vmem>>) attributes {dimension_semantics = [#tpu.dimension_semantics<parallel>, #tpu.dimension_semantics<parallel>], iteration_bounds = array<i64: 2, 1>, scalar_prefetch = 0 : i64, scratch_operands = 0 : i64, tpu.core_type = #tpu.core_type<tc>, window_params = [{transform_indices = @transform_0, window_bounds = array<i64: 1, 96, 48>}, {pipeline_mode = #tpu.pipeline_mode<synchronous>, transform_indices = @transform_1, window_bounds = array<i64: 96, 96>}, {pipeline_mode = #tpu.pipeline_mode<synchronous>, transform_indices = @transform_2, window_bounds = array<i64: 96, 1>}, {pipeline_mode = #tpu.pipeline_mode<synchronous>, transform_indices = @transform_3, window_bounds = array<i64: 96, 1>}, {pipeline_mode = #tpu.pipeline_mode<synchronous>, transform_indices = @transform_4, window_bounds = array<i64: 96, 1>}, {transform_indices = @transform_5, window_bounds = array<i64: 1, 96, 48>}]} {
    %c0 = arith.constant 0 : index
    %c0_0 = arith.constant 0 : index
    %0 = vector.load %arg3[%c0, %c0_0] : memref<96x96xf32, #tpu.memory_space<vmem>>, vector<96x96xf32>
    %c0_1 = arith.constant 0 : index
    %c0_2 = arith.constant 0 : index
    %c0_3 = arith.constant 0 : index
    %1 = vector.load %arg2[%c0_1, %c0_2, %c0_3] : memref<1x96x48xf32, #tpu.memory_space<vmem>>, vector<1x96x48xf32>
    %2 = vector.shape_cast %1 : vector<1x96x48xf32> to vector<96x48xf32>
    %cst = arith.constant dense<0.000000e+00> : vector<96x48xf32>
    %3 = tpu.matmul %0, %2, %cst {dimension_numbers = #tpu.dot_dimension_numbers<[1], [0], [0], [1], [0, 0, 1, 1], [], []>} : vector<96x96xf32>, vector<96x48xf32>, vector<96x48xf32> -> vector<96x48xf32>
    %c0_4 = arith.constant 0 : index
    %c0_5 = arith.constant 0 : index
    %4 = vector.load %arg4[%c0_4, %c0_5] : memref<96x1xf32, #tpu.memory_space<vmem>>, vector<96x1xf32>
    %5 = vector.broadcast %4 : vector<96x1xf32> to vector<96x48xf32>
    %6 = arith.addf %3, %5 : vector<96x48xf32>
    %cst_6 = arith.constant dense<0.000000e+00> : vector<48xf32>
    %7 = vector.multi_reduction <add>, %6, %cst_6 [0] : vector<96x48xf32> to vector<48xf32>
    %8 = vector.shape_cast %7 : vector<48xf32> to vector<1x48xf32>
    %9 = arith.mulf %6, %6 : vector<96x48xf32>
    %cst_7 = arith.constant dense<0.000000e+00> : vector<48xf32>
    %10 = vector.multi_reduction <add>, %9, %cst_7 [0] : vector<96x48xf32> to vector<48xf32>
    %11 = vector.shape_cast %10 : vector<48xf32> to vector<1x48xf32>
    %cst_8 = arith.constant 0.010416667 : f32
    %12 = vector.broadcast %cst_8 : f32 to vector<1x48xf32>
    %13 = arith.mulf %8, %12 : vector<1x48xf32>
    %cst_9 = arith.constant 0.010416667 : f32
    %14 = vector.broadcast %cst_9 : f32 to vector<1x48xf32>
    %15 = arith.mulf %11, %14 : vector<1x48xf32>
    %16 = arith.mulf %13, %13 : vector<1x48xf32>
    %17 = arith.subf %15, %16 : vector<1x48xf32>
    %cst_10 = arith.constant 0.000000e+00 : f32
    %18 = vector.broadcast %cst_10 : f32 to vector<1x48xf32>
    %19 = arith.maximumf %17, %18 : vector<1x48xf32>
    %20 = vector.broadcast %13 : vector<1x48xf32> to vector<96x48xf32>
    %21 = arith.subf %6, %20 : vector<96x48xf32>
    %cst_11 = arith.constant 9.99999974E-6 : f32
    %22 = vector.broadcast %cst_11 : f32 to vector<1x48xf32>
    %23 = arith.addf %19, %22 : vector<1x48xf32>
    %24 = math.rsqrt %23 : vector<1x48xf32>
    %25 = vector.broadcast %24 : vector<1x48xf32> to vector<96x48xf32>
    %26 = arith.mulf %21, %25 : vector<96x48xf32>
    %c0_12 = arith.constant 0 : index
    %c0_13 = arith.constant 0 : index
    %27 = vector.load %arg5[%c0_12, %c0_13] : memref<96x1xf32, #tpu.memory_space<vmem>>, vector<96x1xf32>
    %28 = vector.broadcast %27 : vector<96x1xf32> to vector<96x48xf32>
    %29 = arith.mulf %26, %28 : vector<96x48xf32>
    %c0_14 = arith.constant 0 : index
    %c0_15 = arith.constant 0 : index
    %30 = vector.load %arg6[%c0_14, %c0_15] : memref<96x1xf32, #tpu.memory_space<vmem>>, vector<96x1xf32>
    %31 = vector.broadcast %30 : vector<96x1xf32> to vector<96x48xf32>
    %32 = arith.addf %29, %31 : vector<96x48xf32>
    %c0_16 = arith.constant 0 : index
    %c0_17 = arith.constant 0 : index
    %c0_18 = arith.constant 0 : index
    %33 = vector.load %arg7[%c0_16, %c0_17, %c0_18] : memref<1x96x48xf32, #tpu.memory_space<vmem>>, vector<1x96x48xf32>
    %34 = vector.shape_cast %33 : vector<1x96x48xf32> to vector<96x48xf32>
    %35 = vector.shape_cast %32 : vector<96x48xf32> to vector<1x96x48xf32>
    tpu.vector_store %arg7[%c0_16, %c0_17, %c0_18], %35 {strides = array<i32>} : memref<1x96x48xf32, #tpu.memory_space<vmem>>, vector<1x96x48xf32>,
    return
  }
  func.func @transform_0(%arg0: i32, %arg1: i32) -> (i32, i32, i32) {
    %c0_i32 = arith.constant 0 : i32
    %c0_i32_0 = arith.constant 0 : i32
    return %arg0, %c0_i32, %arg1 : i32, i32, i32
  }
  func.func @transform_1(%arg0: i32, %arg1: i32) -> (i32, i32) {
    %c0_i32 = arith.constant 0 : i32
    %c0_i32_0 = arith.constant 0 : i32
    %c0_i32_1 = arith.constant 0 : i32
    return %c0_i32, %c0_i32_0 : i32, i32
  }
  func.func @transform_2(%arg0: i32, %arg1: i32) -> (i32, i32) {
    %c0_i32 = arith.constant 0 : i32
    %c0_i32_0 = arith.constant 0 : i32
    %c0_i32_1 = arith.constant 0 : i32
    return %c0_i32, %c0_i32_0 : i32, i32
  }
  func.func @transform_3(%arg0: i32, %arg1: i32) -> (i32, i32) {
    %c0_i32 = arith.constant 0 : i32
    %c0_i32_0 = arith.constant 0 : i32
    %c0_i32_1 = arith.constant 0 : i32
    return %c0_i32, %c0_i32_0 : i32, i32
  }
  func.func @transform_4(%arg0: i32, %arg1: i32) -> (i32, i32) {
    %c0_i32 = arith.constant 0 : i32
    %c0_i32_0 = arith.constant 0 : i32
    %c0_i32_1 = arith.constant 0 : i32
    return %c0_i32, %c0_i32_0 : i32, i32
  }
  func.func @transform_5(%arg0: i32, %arg1: i32) -> (i32, i32, i32) {
    %c0_i32 = arith.constant 0 : i32
    %c0_i32_0 = arith.constant 0 : i32
    return %arg0, %c0_i32, %arg1 : i32, i32, i32
  }
}

</mosaic_0001>

<llo_original>
// kernel: tpu_custom_call.1
$region0: #{tpu_custom_call.1}
  #allocation0 [shape = 'u32[]', space=smem, size = 0x4, offset = 0x4, fixed_abs, tag = 'smem constant byte address 0x4 - core index']
  #allocation1 [shape = 'u32[144,128]{1,0:T(1,128)}', space=vmem, size = 0x12000, scoped, tag = 'internal scratch']
  %s0 = inlined_call_operand.vmem [shape: f32[2,96,48], index: 0, kind: input, shape index: {}]
  %s1 = inlined_call_operand.vmem [shape: f32[96,96], index: 1, kind: input, shape index: {}]
  %s2 = inlined_call_operand.vmem [shape: f32[96,1], index: 2, kind: input, shape index: {}]
  %s3 = inlined_call_operand.vmem [shape: f32[96,1], index: 3, kind: input, shape index: {}]
  %s4 = inlined_call_operand.vmem [shape: f32[96,1], index: 4, kind: input, shape index: {}]
  %s5 = inlined_call_operand.vmem [shape: f32[2,96,48], index: 5, kind: output, shape index: {}]
  %s6 = sld [smem:[#allocation0]]
  $region53: #{tpu_custom_call.1} parent=0
    _
  %s8 = ssub.s32 1, %s6
  %s9 = scalar_select 0, %s8, %s6
  loop: start=0, step=1, limit=4
  $region2: #{tpu_custom_call.1} parent=0 // loop_pre_header
    _
  $region3: #{tpu_custom_call.1} parent=0 // loop_header
    %s11 = sphi 0, %s15
    %p12 = scmp.ge.s32.totalorder %s11, 4
    %s18 = sphi 0, %s30
    %s19 = sphi 0, %s26
    %s20 = sphi 0, %s18
    %s21 = sphi 0, %s19
    %s22 = sphi 0, %s20
    %s23 = sphi 0, %s21
    %s35 = sphi 0, %s37
    %s38 = sphi 0, %s35
    %s39 = sphi 0, %s38
    %s55 = sphi 0, %s39
    %s59 = sphi 0, %s59
    %s61 = sphi 0, %s59
    %s62 = sphi 0, %s61
    %s76 = sphi 0, %s62
    %s80 = sphi 0, %s80
    %s82 = sphi 0, %s80
    %s83 = sphi 0, %s82
    %s97 = sphi 0, %s83
    %s101 = sphi 0, %s101
    %s103 = sphi 0, %s101
    %s104 = sphi 0, %s103
    %s118 = sphi 0, %s104
    %s122 = sphi 0, %s122
    %s124 = sphi 0, %s122
    %s125 = sphi 0, %s124
    %s139 = sphi 0, %s125
    %s147 = sphi 0, %s149
    %s150 = sphi 0, %s147
    %s151 = sphi 0, %s150
    %s167 = sphi 0, %s151
  $region4: #{tpu_custom_call.1} parent=0 // loop_header_branch
    %14 = sbr.rel (%p12) target = $region8
  $region5: #{tpu_custom_call.1} parent=0 // loop_body
    %s16 = ssub.s32 %s11, 1
    %s17 = ssub.s32 %s11, 2
    %s24 = sadd.s32 1, %s19
    %p25 = scmp.ge.s32.totalorder %s24, 1
    %s26 = scalar_select %p25, 0, %s24
    %s27 = sadd.s32 1, %s18
    %s28 = scalar_select %p25, %s27, %s18
    %p29 = scmp.ge.s32.totalorder %s28, 2
    %s30 = scalar_select %p29, 0, %s28
    %s31 = ssub.s32 %s18, %s30
    %s32 = ssub.s32 %s19, %s26
    %s33 = sor.u32 %s31, %s32
    %p34 = scmp.eq.s32.totalorder %s33, 0
    %s36 = sadd.s32 %s35, 1
    %s37 = scalar_select %p34, %s35, %s36
    %p40 = pneg %p34
    %p41 = scmp.eq.s32.totalorder %s11, 1
    %p42 = por %p40, %p41
    %p43 = scmp.ne.s32.totalorder %s35, %s38
    %p44 = scmp.eq.s32.totalorder %s11, 0
    %p45 = por %p43, %p44
    %p46 = scmp.ne.s32.totalorder %s35, %s38
    %p47 = scmp.eq.s32.totalorder %s16, 1
    %p48 = por %p46, %p47
    %p49 = scmp.ne.s32.totalorder %s38, %s39
    %p50 = scmp.eq.s32.totalorder %s16, 0
    %p51 = por %p49, %p50
    %p52 = scmp.ne.s32.totalorder %s38, %s39
    %p53 = scmp.eq.s32.totalorder %s17, 1
    %p54 = por %p52, %p53
    %p56 = scmp.ne.s32.totalorder %s39, %s55
    %p57 = scmp.eq.s32.totalorder %s17, 0
    %p58 = por %p56, %p57
    %s60 = sadd.s32 %s59, 1
    %p63 = scmp.eq.s32.totalorder %s11, 1
    %p64 = scmp.ne.s32.totalorder %s59, %s61
    %p65 = scmp.eq.s32.totalorder %s11, 0
    %p66 = por %p64, %p65
    %p67 = scmp.ne.s32.totalorder %s59, %s61
    %p68 = scmp.eq.s32.totalorder %s16, 1
    %p69 = por %p67, %p68
    %p70 = scmp.ne.s32.totalorder %s61, %s62
    %p71 = scmp.eq.s32.totalorder %s16, 0
    %p72 = por %p70, %p71
    %p73 = scmp.ne.s32.totalorder %s61, %s62
    %p74 = scmp.eq.s32.totalorder %s17, 1
    %p75 = por %p73, %p74
    %p77 = scmp.ne.s32.totalorder %s62, %s76
    %p78 = scmp.eq.s32.totalorder %s17, 0
    %p79 = por %p77, %p78
    %s81 = sadd.s32 %s80, 1
    %p84 = scmp.eq.s32.totalorder %s11, 1
    %p85 = scmp.ne.s32.totalorder %s80, %s82
    %p86 = scmp.eq.s32.totalorder %s11, 0
    %p87 = por %p85, %p86
    %p88 = scmp.ne.s32.totalorder %s80, %s82
    %p89 = scmp.eq.s32.totalorder %s16, 1
    %p90 = por %p88, %p89
    %p91 = scmp.ne.s32.totalorder %s82, %s83
    %p92 = scmp.eq.s32.totalorder %s16, 0
    %p93 = por %p91, %p92
    %p94 = scmp.ne.s32.totalorder %s82, %s83
    %p95 = scmp.eq.s32.totalorder %s17, 1
    %p96 = por %p94, %p95
    %p98 = scmp.ne.s32.totalorder %s83, %s97
    %p99 = scmp.eq.s32.totalorder %s17, 0
    %p100 = por %p98, %p99
    %s102 = sadd.s32 %s101, 1
    %p105 = scmp.eq.s32.totalorder %s11, 1
    %p106 = scmp.ne.s32.totalorder %s101, %s103
    %p107 = scmp.eq.s32.totalorder %s11, 0
    %p108 = por %p106, %p107
    %p109 = scmp.ne.s32.totalorder %s101, %s103
    %p110 = scmp.eq.s32.totalorder %s16, 1
    %p111 = por %p109, %p110
    %p112 = scmp.ne.s32.totalorder %s103, %s104
    %p113 = scmp.eq.s32.totalorder %s16, 0
    %p114 = por %p112, %p113
    %p115 = scmp.ne.s32.totalorder %s103, %s104
    %p116 = scmp.eq.s32.totalorder %s17, 1
    %p117 = por %p115, %p116
    %p119 = scmp.ne.s32.totalorder %s104, %s118
    %p120 = scmp.eq.s32.totalorder %s17, 0
    %p121 = por %p119, %p120
    %s123 = sadd.s32 %s122, 1
    %p126 = scmp.eq.s32.totalorder %s11, 1
    %p127 = scmp.ne.s32.totalorder %s122, %s124
    %p128 = scmp.eq.s32.totalorder %s11, 0
    %p129 = por %p127, %p128
    %p130 = scmp.ne.s32.totalorder %s122, %s124
    %p131 = scmp.eq.s32.totalorder %s16, 1
    %p132 = por %p130, %p131
    %p133 = scmp.ne.s32.totalorder %s124, %s125
    %p134 = scmp.eq.s32.totalorder %s16, 0
    %p135 = por %p133, %p134
    %p136 = scmp.ne.s32.totalorder %s124, %s125
    %p137 = scmp.eq.s32.totalorder %s17, 1
    %p138 = por %p136, %p137
    %p140 = scmp.ne.s32.totalorder %s125, %s139
    %p141 = scmp.eq.s32.totalorder %s17, 0
    %p142 = por %p140, %p141
    %s143 = ssub.s32 %s18, %s30
    %s144 = ssub.s32 %s19, %s26
    %s145 = sor.u32 %s143, %s144
    %p146 = scmp.eq.s32.totalorder %s145, 0
    %s148 = sadd.s32 %s147, 1
    %s149 = scalar_select %p146, %s147, %s148
    %p152 = pneg %p146
    %p153 = scmp.eq.s32.totalorder %s11, 1
    %p154 = por %p152, %p153
    %p155 = scmp.ne.s32.totalorder %s147, %s150
    %p156 = scmp.eq.s32.totalorder %s11, 0
    %p157 = por %p155, %p156
    %p158 = scmp.ne.s32.totalorder %s147, %s150
    %p159 = scmp.eq.s32.totalorder %s16, 1
    %p160 = por %p158, %p159
    %p161 = scmp.ne.s32.totalorder %s150, %s151
    %p162 = scmp.eq.s32.totalorder %s16, 0
    %p163 = por %p161, %p162
    %p164 = scmp.ne.s32.totalorder %s150, %s151
    %p165 = scmp.eq.s32.totalorder %s17, 1
    %p166 = por %p164, %p165
    %p168 = scmp.ne.s32.totalorder %s151, %s167
    %p169 = scmp.eq.s32.totalorder %s17, 0
    %p170 = por %p168, %p169
    %p171 = scmp.le.s32.totalorder 1, %s11
    %p172 = scmp.lt.s32.totalorder %s11, 3
    %p173 = pnand %p171, %p172
    %p174 = pneg %p173
    // Predicated region
    $region9: #{tpu_custom_call.1} parent=5 // pred_check
      _
    $region10: #{tpu_custom_call.1} parent=5 // pred_check_branch
      %176 = sbr.rel (%p173) target = $region12
    $region11: #{tpu_custom_call.1} parent=5 // pred_region
      %s177 = ssub.s32 %s11, 1
      // Predicated region
      $region13: #{tpu_custom_call.1} parent=11 // pred_check
        %p178 = pneg %p72
      $region14: #{tpu_custom_call.1} parent=11 // pred_check_branch
        %180 = sbr.rel (%p178) target = $region16
      $region15: #{tpu_custom_call.1} parent=11 // pred_region
        _
      $region16: #{tpu_custom_call.1} parent=11 // pred_fallthru
        _
      // Predicated region
      $region17: #{tpu_custom_call.1} parent=11 // pred_check
        %p181 = pneg %p93
      $region18: #{tpu_custom_call.1} parent=11 // pred_check_branch
        %183 = sbr.rel (%p181) target = $region20
      $region19: #{tpu_custom_call.1} parent=11 // pred_region
        _
      $region20: #{tpu_custom_call.1} parent=11 // pred_fallthru
        _
      // Predicated region
      $region21: #{tpu_custom_call.1} parent=11 // pred_check
        %p184 = pneg %p114
      $region22: #{tpu_custom_call.1} parent=11 // pred_check_branch
        %186 = sbr.rel (%p184) target = $region24
      $region23: #{tpu_custom_call.1} parent=11 // pred_region
        _
      $region24: #{tpu_custom_call.1} parent=11 // pred_fallthru
        _
      // Predicated region
      $region25: #{tpu_custom_call.1} parent=11 // pred_check
        %p187 = pneg %p135
      $region26: #{tpu_custom_call.1} parent=11 // pred_check_branch
        %189 = sbr.rel (%p187) target = $region28
      $region27: #{tpu_custom_call.1} parent=11 // pred_region
        _
      $region28: #{tpu_custom_call.1} parent=11 // pred_fallthru
        _
    $region12: #{tpu_custom_call.1} parent=5 // pred_fallthru
      _
    %p190 = scmp.lt.s32.totalorder %s11, 2
    // Predicated region
    $region29: #{tpu_custom_call.1} parent=5 // pred_check
      %p191 = pneg %p190
    $region30: #{tpu_custom_call.1} parent=5 // pred_check_branch
      %193 = sbr.rel (%p191) target = $region32
    $region31: #{tpu_custom_call.1} parent=5 // pred_region
      // Predicated region
      $region33: #{tpu_custom_call.1} parent=31 // pred_check
        %p194 = pneg %p45
      $region34: #{tpu_custom_call.1} parent=31 // pred_check_branch
        %196 = sbr.rel (%p194) target = $region36
      $region35: #{tpu_custom_call.1} parent=31 // pred_region
        %p197 = scmp.lt.s32.totalorder %s18, 1
        %s198 = scalar_select %p197, %s18, 1
        %p199 = scmp.lt.s32.totalorder %s19, 0
        %s200 = scalar_select %p199, %s19, 0
        %s201 = smul.addr %s198, 12
        %s202 = sadd.s32 %s200, %s201
        %s203 = smul.addr %s202, 8
        %s204 = scalar_lea.vmem %s0, %s203
      $region36: #{tpu_custom_call.1} parent=31 // pred_fallthru
        _
    $region32: #{tpu_custom_call.1} parent=5 // pred_fallthru
      _
    %p205 = scmp.le.s32.totalorder 1, %s11
    %p206 = scmp.lt.s32.totalorder %s11, 3
    %p207 = pnand %p205, %p206
    %p208 = pneg %p207
    // Predicated region
    $region37: #{tpu_custom_call.1} parent=5 // pred_check
      _
    $region38: #{tpu_custom_call.1} parent=5 // pred_check_branch
      %210 = sbr.rel (%p207) target = $region40
    $region39: #{tpu_custom_call.1} parent=5 // pred_region
      %s211 = ssub.s32 %s11, 1
      %p212 = scmp.lt.s32.totalorder %s20, 1
      %s213 = scalar_select %p212, %s20, 1
      %p214 = scmp.lt.s32.totalorder %s21, 0
      %s215 = scalar_select %p214, %s21, 0
      %s216 = smul.addr %s213, 12
      %s217 = sadd.s32 %s215, %s216
      %s218 = smul.addr %s217, 8
      %s219 = scalar_lea.vmem %s0, %s218
      %p220 = pneg %p51
      %p221 = pneg %p48
      %p222 = pneg %p72
      %p223 = pneg %p69
      %p224 = pneg %p93
      %p225 = pneg %p90
      %p226 = pneg %p114
      %p227 = pneg %p111
      %p228 = pneg %p135
      %p229 = pneg %p132
      %p230 = pneg %p163
      %p231 = pneg %p160
      %p232 = scmp.lt.s32.totalorder %s20, 1
      %s233 = scalar_select %p232, %s20, 1
      %p234 = scmp.lt.s32.totalorder %s21, 0
      %s235 = scalar_select %p234, %s21, 0
      %s236 = smul.addr %s233, 12
      %s237 = sadd.s32 %s235, %s236
      %s238 = smul.addr %s237, 8
      %s239 = scalar_lea.vmem %s5, %s238
      %p240 = scmp.lt.s32.totalorder %s20, 1
      %s241 = scalar_select %p240, %s20, 1
      %p242 = scmp.lt.s32.totalorder %s21, 0
      %s243 = scalar_select %p242, %s21, 0
      %s244 = smul.addr %s241, 12
      %s245 = sadd.s32 %s243, %s244
      %s246 = smul.addr %s245, 8
      %s247 = scalar_lea.vmem %s0, %s246
      %p248 = scmp.lt.s32.totalorder %s20, 1
      %s249 = scalar_select %p248, %s20, 1
      %p250 = scmp.lt.s32.totalorder %s21, 0
      %s251 = scalar_select %p250, %s21, 0
      %s252 = smul.addr %s249, 12
      %s253 = sadd.s32 %s251, %s252
      %s254 = smul.addr %s253, 8
      %s255 = scalar_lea.vmem %s5, %s254
      %v256 = vld [vmem:[%s1] sm:$0xff]
      %v257 = vld [vmem:[%s1 + $0x8] sm:$0xff]
      %v258 = vld [vmem:[%s1 + $0x10] sm:$0xff]
      %v259 = vld [vmem:[%s1 + $0x18] sm:$0xff]
      %v260 = vld [vmem:[%s1 + $0x20] sm:$0xff]
      %v261 = vld [vmem:[%s1 + $0x28] sm:$0xff]
      %v262 = vld [vmem:[%s1 + $0x30] sm:$0xff]
      %v263 = vld [vmem:[%s1 + $0x38] sm:$0xff]
      %v264 = vld [vmem:[%s1 + $0x40] sm:$0xff]
      %v265 = vld [vmem:[%s1 + $0x48] sm:$0xff]
      %v266 = vld [vmem:[%s1 + $0x50] sm:$0xff]
      %v267 = vld [vmem:[%s1 + $0x58] sm:$0xff]
      %v268 = vld [vmem:[%s247] sm:$0xff]
      %v269 = vld [vmem:[%s247 + $0x8] sm:$0xff]
      %v270 = vld [vmem:[%s247 + $0x10] sm:$0xff]
      %v271 = vld [vmem:[%s247 + $0x18] sm:$0xff]
      %v272 = vld [vmem:[%s247 + $0x20] sm:$0xff]
      %v273 = vld [vmem:[%s247 + $0x28] sm:$0xff]
      %v274 = vld [vmem:[%s247 + $0x30] sm:$0xff]
      %v275 = vld [vmem:[%s247 + $0x38] sm:$0xff]
      %v276 = vld [vmem:[%s247 + $0x40] sm:$0xff]
      %v277 = vld [vmem:[%s247 + $0x48] sm:$0xff]
      %v278 = vld [vmem:[%s247 + $0x50] sm:$0xff]
      %v279 = vld [vmem:[%s247 + $0x58] sm:$0xff]
      %v280 = vld [vmem:[%s2] sm:$0xff]
      %v281 = vld [vmem:[%s2 + $0x8] sm:$0xff]
      %v282 = vld [vmem:[%s2 + $0x10] sm:$0xff]
      %v283 = vld [vmem:[%s2 + $0x18] sm:$0xff]
      %v284 = vld [vmem:[%s2 + $0x20] sm:$0xff]
      %v285 = vld [vmem:[%s2 + $0x28] sm:$0xff]
      %v286 = vld [vmem:[%s2 + $0x30] sm:$0xff]
      %v287 = vld [vmem:[%s2 + $0x38] sm:$0xff]
      %v288 = vld [vmem:[%s2 + $0x40] sm:$0xff]
      %v289 = vld [vmem:[%s2 + $0x48] sm:$0xff]
      %v290 = vld [vmem:[%s2 + $0x50] sm:$0xff]
      %v291 = vld [vmem:[%s2 + $0x58] sm:$0xff]
      %293 = vset.pattern.permute.xlu0 0
      %294 = vperm.xlu0 %293, %v280
      %v295 = vpop.permute.xlu0 %294
      %298 = vset.pattern.permute.xlu0 0
      %299 = vperm.xlu0 %298, %v281
      %v300 = vpop.permute.xlu0 %299
      %303 = vset.pattern.permute.xlu0 0
      %304 = vperm.xlu0 %303, %v282
      %v305 = vpop.permute.xlu0 %304
      %308 = vset.pattern.permute.xlu0 0
      %309 = vperm.xlu0 %308, %v283
      %v310 = vpop.permute.xlu0 %309
      %313 = vset.pattern.permute.xlu0 0
      %314 = vperm.xlu0 %313, %v284
      %v315 = vpop.permute.xlu0 %314
      %318 = vset.pattern.permute.xlu0 0
      %319 = vperm.xlu0 %318, %v285
      %v320 = vpop.permute.xlu0 %319
      %323 = vset.pattern.permute.xlu0 0
      %324 = vperm.xlu0 %323, %v286
      %v325 = vpop.permute.xlu0 %324
      %328 = vset.pattern.permute.xlu0 0
      %329 = vperm.xlu0 %328, %v287
      %v330 = vpop.permute.xlu0 %329
      %333 = vset.pattern.permute.xlu0 0
      %334 = vperm.xlu0 %333, %v288
      %v335 = vpop.permute.xlu0 %334
      %338 = vset.pattern.permute.xlu0 0
      %339 = vperm.xlu0 %338, %v289
      %v340 = vpop.permute.xlu0 %339
      %343 = vset.pattern.permute.xlu0 0
      %344 = vperm.xlu0 %343, %v290
      %v345 = vpop.permute.xlu0 %344
      %348 = vset.pattern.permute.xlu0 0
      %349 = vperm.xlu0 %348, %v291
      %v350 = vpop.permute.xlu0 %349
      %vm352 = vcmask 785408
      %v354 = vsel %vm352, %v256, 0
      %v357 = vsel %vm352, %v257, 0
      %v360 = vsel %vm352, %v258, 0
      %v363 = vsel %vm352, %v259, 0
      %v366 = vsel %vm352, %v260, 0
      %v369 = vsel %vm352, %v261, 0
      %v372 = vsel %vm352, %v262, 0
      %v375 = vsel %vm352, %v263, 0
      %v378 = vsel %vm352, %v264, 0
      %v381 = vsel %vm352, %v265, 0
      %v384 = vsel %vm352, %v266, 0
      %v387 = vsel %vm352, %v267, 0
      %389 = vmatprep.subr.mxu0 0.0
      %390 = vmatpush1.msra.mxu0 %v268
      %391 = vmatprep.subr.mxu0 0.0
      %392 = vmatpush1.msra.mxu0 %v269
      %393 = vmatprep.subr.mxu0 0.0
      %394 = vmatpush1.msra.mxu0 %v270
      %395 = vmatprep.subr.mxu0 0.0
      %396 = vmatpush1.msra.mxu0 %v271
      %397 = vmatprep.subr.mxu0 0.0
      %398 = vmatpush1.msra.mxu0 %v272
      %399 = vmatprep.subr.mxu0 0.0
      %400 = vmatpush1.msra.mxu0 %v273
      %401 = vmatprep.subr.mxu0 0.0
      %402 = vmatpush1.msra.mxu0 %v274
      %403 = vmatprep.subr.mxu0 0.0
      %404 = vmatpush1.msra.mxu0 %v275
      %405 = vmatprep.subr.mxu0 0.0
      %406 = vmatpush1.msra.mxu0 %v276
      %407 = vmatprep.subr.mxu0 0.0
      %408 = vmatpush1.msra.mxu0 %v277
      %409 = vmatprep.subr.mxu0 0.0
      %410 = vmatpush1.msra.mxu0 %v278
      %411 = vmatprep.subr.mxu0 0.0
      %412 = vmatpush1.msra.mxu0 %v279
      %413 = vmatprep.subr.mxu0 0.0
      %414 = vmatpush1.msra.mxu0 0.0
      %415 = vmatprep.subr.mxu0 0.0
      %416 = vmatpush1.msra.mxu0 0.0
      %417 = vmatprep.subr.mxu0 0.0
      %418 = vmatpush1.msra.mxu0 0.0
      %419 = vmatprep.subr.mxu0 0.0
      %420 = vmatpush1.msra.mxu0 0.0
      %421 = vmatprep.subr.mxu0 0.0
      %422 = vmatpush1.msra.mxu0 0.0
      %423 = vmatprep.subr.mxu0 0.0
      %424 = vmatpush1.msra.mxu0 0.0
      %425 = vmatprep.subr.mxu0 0.0
      %426 = vmatpush1.msra.mxu0 0.0
      %427 = vmatprep.subr.mxu0 0.0
      %428 = vmatpush1.msra.mxu0 0.0
      %429 = vmatprep.subr.mxu0 0.0
      %430 = vmatpush1.msra.mxu0 0.0
      %431 = vmatprep.subr.mxu0 0.0
      %432 = vmatpush1.msra.mxu0 0.0
      %433 = vmatprep.subr.mxu0 0.0
      %434 = vmatpush1.msra.mxu0 0.0
      %435 = vmatprep.subr.mxu0 0.0
      %436 = vmatpush1.msra.mxu0 0.0
      %437 = vmatprep.subr.mxu0 0.0
      %438 = vmatpush1.msra.mxu0 0.0
      %439 = vmatprep.subr.mxu0 0.0
      %440 = vmatpush1.msra.mxu0 0.0
      %441 = vmatprep.subr.mxu0 0.0
      %442 = vmatpush1.msra.mxu0 0.0
      %443 = vmatprep.subr.mxu0 0.0
      %444 = vmatpush1.msra.mxu0 0.0
      %445 = vmatprep.subr.mxu0 0.0
      %446 = vmatpush1.msra.mxu0 0.0
      %447 = vmatprep.subr.mxu0 0.0
      %448 = vmatpush1.msra.mxu0 0.0
      %449 = vmatprep.subr.mxu0 0.0
      %450 = vmatpush1.msra.mxu0 0.0
      %451 = vmatprep.subr.mxu0 0.0
      %452 = vmatpush1.msra.mxu0 0.0
      %453 = vmatprep.mubr.f32.mxu0 0.0
      %454 = vmatmul.mubr.f32.gmra.mrb[0].mxu0 %v354
      %v455 = vpop.f32.mrb[0].mxu0
      %v456 = vadd.f32 %v295, %v455
      %v457 = vpop.f32.mrb[0].mxu0
      %458 = vmatprep.mubr.f32.mxu0 0.0
      %459 = vmatmul.mubr.f32.gmra.mrb[0].mxu0 %v357
      %v460 = vpop.f32.mrb[0].mxu0
      %v461 = vadd.f32 %v300, %v460
      %v462 = vpop.f32.mrb[0].mxu0
      %463 = vmatprep.mubr.f32.mxu0 0.0
      %464 = vmatmul.mubr.f32.gmra.mrb[0].mxu0 %v360
      %v465 = vpop.f32.mrb[0].mxu0
      %v466 = vadd.f32 %v305, %v465
      %v467 = vpop.f32.mrb[0].mxu0
      %468 = vmatprep.mubr.f32.mxu0 0.0
      %469 = vmatmul.mubr.f32.gmra.mrb[0].mxu0 %v363
      %v470 = vpop.f32.mrb[0].mxu0
      %v471 = vadd.f32 %v310, %v470
      %v472 = vpop.f32.mrb[0].mxu0
      %473 = vmatprep.mubr.f32.mxu0 0.0
      %474 = vmatmul.mubr.f32.gmra.mrb[0].mxu0 %v366
      %v475 = vpop.f32.mrb[0].mxu0
      %v476 = vadd.f32 %v315, %v475
      %v477 = vpop.f32.mrb[0].mxu0
      %478 = vmatprep.mubr.f32.mxu0 0.0
      %479 = vmatmul.mubr.f32.gmra.mrb[0].mxu0 %v369
      %v480 = vpop.f32.mrb[0].mxu0
      %v481 = vadd.f32 %v320, %v480
      %v482 = vpop.f32.mrb[0].mxu0
      %483 = vmatprep.mubr.f32.mxu0 0.0
      %484 = vmatmul.mubr.f32.gmra.mrb[0].mxu0 %v372
      %v485 = vpop.f32.mrb[0].mxu0
      %v486 = vadd.f32 %v325, %v485
      %v487 = vpop.f32.mrb[0].mxu0
      %488 = vmatprep.mubr.f32.mxu0 0.0
      %489 = vmatmul.mubr.f32.gmra.mrb[0].mxu0 %v375
      %v490 = vpop.f32.mrb[0].mxu0
      %v491 = vadd.f32 %v330, %v490
      %v492 = vpop.f32.mrb[0].mxu0
      %493 = vmatprep.mubr.f32.mxu0 0.0
      %494 = vmatmul.mubr.f32.gmra.mrb[0].mxu0 %v378
      %v495 = vpop.f32.mrb[0].mxu0
      %v496 = vadd.f32 %v335, %v495
      %v497 = vpop.f32.mrb[0].mxu0
      %498 = vmatprep.mubr.f32.mxu0 0.0
      %499 = vmatmul.mubr.f32.gmra.mrb[0].mxu0 %v381
      %v500 = vpop.f32.mrb[0].mxu0
      %v501 = vadd.f32 %v340, %v500
      %v502 = vpop.f32.mrb[0].mxu0
      %503 = vmatprep.mubr.f32.mxu0 0.0
      %504 = vmatmul.mubr.f32.gmra.mrb[0].mxu0 %v384
      %v505 = vpop.f32.mrb[0].mxu0
      %v506 = vadd.f32 %v345, %v505
      %v507 = vpop.f32.mrb[0].mxu0
      %508 = vmatprep.mubr.f32.mxu0 0.0
      %509 = vmatmul.mubr.f32.gmra.mrb[0].mxu0 %v387
      %v510 = vpop.f32.mrb[0].mxu0
      %v511 = vadd.f32 %v350, %v510
      %v512 = vpop.f32.mrb[0].mxu0
      %513 = vdwg.mxu0
      %vm514 = vcmask 392192
      %v515 = vsel %vm514, %v456, 0.0
      %v516 = vsel %vm514, %v461, 0.0
      %v517 = vadd.f32 %v515, %v516
      %v518 = vsel %vm514, %v466, 0.0
      %v519 = vadd.f32 %v517, %v518
      %v520 = vsel %vm514, %v471, 0.0
      %v521 = vadd.f32 %v519, %v520
      %v522 = vsel %vm514, %v476, 0.0
      %v523 = vadd.f32 %v521, %v522
      %v524 = vsel %vm514, %v481, 0.0
      %v525 = vadd.f32 %v523, %v524
      %v526 = vsel %vm514, %v486, 0.0
      %v527 = vadd.f32 %v525, %v526
      %v528 = vsel %vm514, %v491, 0.0
      %v529 = vadd.f32 %v527, %v528
      %v530 = vsel %vm514, %v496, 0.0
      %v531 = vadd.f32 %v529, %v530
      %v532 = vsel %vm514, %v501, 0.0
      %v533 = vadd.f32 %v531, %v532
      %v534 = vsel %vm514, %v506, 0.0
      %v535 = vadd.f32 %v533, %v534
      %v536 = vsel %vm514, %v511, 0.0
      %v537 = vadd.f32 %v535, %v536
      %v538 = vrot.slane %v537, 4
      %v539 = vadd.f32 %v537, %v538
      %v540 = vrot.slane %v539, 2
      %v541 = vadd.f32 %v539, %v540
      %v542 = vrot.slane %v541, 1
      %v543 = vadd.f32 %v541, %v542
      %v544 = vmul.f32 %v456, %v456
      %v545 = vmul.f32 %v461, %v461
      %v546 = vmul.f32 %v466, %v466
      %v547 = vmul.f32 %v471, %v471
      %v548 = vmul.f32 %v476, %v476
      %v549 = vmul.f32 %v481, %v481
      %v550 = vmul.f32 %v486, %v486
      %v551 = vmul.f32 %v491, %v491
      %v552 = vmul.f32 %v496, %v496
      %v553 = vmul.f32 %v501, %v501
      %v554 = vmul.f32 %v506, %v506
      %v555 = vmul.f32 %v511, %v511
      %v556 = vsel %vm514, %v544, 0.0
      %v557 = vsel %vm514, %v545, 0.0
      %v558 = vadd.f32 %v556, %v557
      %v559 = vsel %vm514, %v546, 0.0
      %v560 = vadd.f32 %v558, %v559
      %v561 = vsel %vm514, %v547, 0.0
      %v562 = vadd.f32 %v560, %v561
      %v563 = vsel %vm514, %v548, 0.0
      %v564 = vadd.f32 %v562, %v563
      %v565 = vsel %vm514, %v549, 0.0
      %v566 = vadd.f32 %v564, %v565
      %v567 = vsel %vm514, %v550, 0.0
      %v568 = vadd.f32 %v566, %v567
      %v569 = vsel %vm514, %v551, 0.0
      %v570 = vadd.f32 %v568, %v569
      %v571 = vsel %vm514, %v552, 0.0
      %v572 = vadd.f32 %v570, %v571
      %v573 = vsel %vm514, %v553, 0.0
      %v574 = vadd.f32 %v572, %v573
      %v575 = vsel %vm514, %v554, 0.0
      %v576 = vadd.f32 %v574, %v575
      %v577 = vsel %vm514, %v555, 0.0
      %v578 = vadd.f32 %v576, %v577
      %v579 = vrot.slane %v578, 4
      %v580 = vadd.f32 %v578, %v579
      %v581 = vrot.slane %v580, 2
      %v582 = vadd.f32 %v580, %v581
      %v583 = vrot.slane %v582, 1
      %v584 = vadd.f32 %v582, %v583
      %v585 = vmul.f32 %v543, 0.010416667
      %v586 = vmul.f32 %v584, 0.010416667
      %v587 = vmul.f32 %v585, %v585
      %v588 = vsub.f32 %v586, %v587
      %v589 = vmax.f32 %v588, 0.0
      %v590 = vsub.f32 %v456, %v585
      %v591 = vsub.f32 %v461, %v585
      %v592 = vsub.f32 %v466, %v585
      %v593 = vsub.f32 %v471, %v585
      %v594 = vsub.f32 %v476, %v585
      %v595 = vsub.f32 %v481, %v585
      %v596 = vsub.f32 %v486, %v585
      %v597 = vsub.f32 %v491, %v585
      %v598 = vsub.f32 %v496, %v585
      %v599 = vsub.f32 %v501, %v585
      %v600 = vsub.f32 %v506, %v585
      %v601 = vsub.f32 %v511, %v585
      %v602 = vadd.f32 %v589, 1e-05
      %v603 = vrsqrt.pop %v602
      %v604 = vmul.f32 %v590, %v603
      %v605 = vmul.f32 %v591, %v603
      %v606 = vmul.f32 %v592, %v603
      %v607 = vmul.f32 %v593, %v603
      %v608 = vmul.f32 %v594, %v603
      %v609 = vmul.f32 %v595, %v603
      %v610 = vmul.f32 %v596, %v603
      %v611 = vmul.f32 %v597, %v603
      %v612 = vmul.f32 %v598, %v603
      %v613 = vmul.f32 %v599, %v603
      %v614 = vmul.f32 %v600, %v603
      %v615 = vmul.f32 %v601, %v603
      %v616 = vld [vmem:[%s3] sm:$0xff]
      %v617 = vld [vmem:[%s3 + $0x8] sm:$0xff]
      %v618 = vld [vmem:[%s3 + $0x10] sm:$0xff]
      %v619 = vld [vmem:[%s3 + $0x18] sm:$0xff]
      %v620 = vld [vmem:[%s3 + $0x20] sm:$0xff]
      %v621 = vld [vmem:[%s3 + $0x28] sm:$0xff]
      %v622 = vld [vmem:[%s3 + $0x30] sm:$0xff]
      %v623 = vld [vmem:[%s3 + $0x38] sm:$0xff]
      %v624 = vld [vmem:[%s3 + $0x40] sm:$0xff]
      %v625 = vld [vmem:[%s3 + $0x48] sm:$0xff]
      %v626 = vld [vmem:[%s3 + $0x50] sm:$0xff]
      %v627 = vld [vmem:[%s3 + $0x58] sm:$0xff]
      %629 = vset.pattern.permute.xlu0 0
      %630 = vperm.xlu0 %629, %v616
      %v631 = vpop.permute.xlu0 %630
      %634 = vset.pattern.permute.xlu0 0
      %635 = vperm.xlu0 %634, %v617
      %v636 = vpop.permute.xlu0 %635
      %639 = vset.pattern.permute.xlu0 0
      %640 = vperm.xlu0 %639, %v618
      %v641 = vpop.permute.xlu0 %640
      %644 = vset.pattern.permute.xlu0 0
      %645 = vperm.xlu0 %644, %v619
      %v646 = vpop.permute.xlu0 %645
      %649 = vset.pattern.permute.xlu0 0
      %650 = vperm.xlu0 %649, %v620
      %v651 = vpop.permute.xlu0 %650
      %654 = vset.pattern.permute.xlu0 0
      %655 = vperm.xlu0 %654, %v621
      %v656 = vpop.permute.xlu0 %655
      %659 = vset.pattern.permute.xlu0 0
      %660 = vperm.xlu0 %659, %v622
      %v661 = vpop.permute.xlu0 %660
      %664 = vset.pattern.permute.xlu0 0
      %665 = vperm.xlu0 %664, %v623
      %v666 = vpop.permute.xlu0 %665
      %669 = vset.pattern.permute.xlu0 0
      %670 = vperm.xlu0 %669, %v624
      %v671 = vpop.permute.xlu0 %670
      %674 = vset.pattern.permute.xlu0 0
      %675 = vperm.xlu0 %674, %v625
      %v676 = vpop.permute.xlu0 %675
      %679 = vset.pattern.permute.xlu0 0
      %680 = vperm.xlu0 %679, %v626
      %v681 = vpop.permute.xlu0 %680
      %684 = vset.pattern.permute.xlu0 0
      %685 = vperm.xlu0 %684, %v627
      %v686 = vpop.permute.xlu0 %685
      %v688 = vmul.f32 %v604, %v631
      %v689 = vmul.f32 %v605, %v636
      %v690 = vmul.f32 %v606, %v641
      %v691 = vmul.f32 %v607, %v646
      %v692 = vmul.f32 %v608, %v651
      %v693 = vmul.f32 %v609, %v656
      %v694 = vmul.f32 %v610, %v661
      %v695 = vmul.f32 %v611, %v666
      %v696 = vmul.f32 %v612, %v671
      %v697 = vmul.f32 %v613, %v676
      %v698 = vmul.f32 %v614, %v681
      %v699 = vmul.f32 %v615, %v686
      %v700 = vld [vmem:[%s4] sm:$0xff]
      %v701 = vld [vmem:[%s4 + $0x8] sm:$0xff]
      %v702 = vld [vmem:[%s4 + $0x10] sm:$0xff]
      %v703 = vld [vmem:[%s4 + $0x18] sm:$0xff]
      %v704 = vld [vmem:[%s4 + $0x20] sm:$0xff]
      %v705 = vld [vmem:[%s4 + $0x28] sm:$0xff]
      %v706 = vld [vmem:[%s4 + $0x30] sm:$0xff]
      %v707 = vld [vmem:[%s4 + $0x38] sm:$0xff]
      %v708 = vld [vmem:[%s4 + $0x40] sm:$0xff]
      %v709 = vld [vmem:[%s4 + $0x48] sm:$0xff]
      %v710 = vld [vmem:[%s4 + $0x50] sm:$0xff]
      %v711 = vld [vmem:[%s4 + $0x58] sm:$0xff]
      %713 = vset.pattern.permute.xlu0 0
      %714 = vperm.xlu0 %713, %v700
      %v715 = vpop.permute.xlu0 %714
      %718 = vset.pattern.permute.xlu0 0
      %719 = vperm.xlu0 %718, %v701
      %v720 = vpop.permute.xlu0 %719
      %723 = vset.pattern.permute.xlu0 0
      %724 = vperm.xlu0 %723, %v702
      %v725 = vpop.permute.xlu0 %724
      %728 = vset.pattern.permute.xlu0 0
      %729 = vperm.xlu0 %728, %v703
      %v730 = vpop.permute.xlu0 %729
      %733 = vset.pattern.permute.xlu0 0
      %734 = vperm.xlu0 %733, %v704
      %v735 = vpop.permute.xlu0 %734
      %738 = vset.pattern.permute.xlu0 0
      %739 = vperm.xlu0 %738, %v705
      %v740 = vpop.permute.xlu0 %739
      %743 = vset.pattern.permute.xlu0 0
      %744 = vperm.xlu0 %743, %v706
      %v745 = vpop.permute.xlu0 %744
      %748 = vset.pattern.permute.xlu0 0
      %749 = vperm.xlu0 %748, %v707
      %v750 = vpop.permute.xlu0 %749
      %753 = vset.pattern.permute.xlu0 0
      %754 = vperm.xlu0 %753, %v708
      %v755 = vpop.permute.xlu0 %754
      %758 = vset.pattern.permute.xlu0 0
      %759 = vperm.xlu0 %758, %v709
      %v760 = vpop.permute.xlu0 %759
      %763 = vset.pattern.permute.xlu0 0
      %764 = vperm.xlu0 %763, %v710
      %v765 = vpop.permute.xlu0 %764
      %768 = vset.pattern.permute.xlu0 0
      %769 = vperm.xlu0 %768, %v711
      %v770 = vpop.permute.xlu0 %769
      %v772 = vadd.f32 %v688, %v715
      %v773 = vadd.f32 %v689, %v720
      %v774 = vadd.f32 %v690, %v725
      %v775 = vadd.f32 %v691, %v730
      %v776 = vadd.f32 %v692, %v735
      %v777 = vadd.f32 %v693, %v740
      %v778 = vadd.f32 %v694, %v745
      %v779 = vadd.f32 %v695, %v750
      %v780 = vadd.f32 %v696, %v755
      %v781 = vadd.f32 %v697, %v760
      %v782 = vadd.f32 %v698, %v765
      %v783 = vadd.f32 %v699, %v770
      %784 = vst.msk [vmem:[%s255] sm:$0xff] %vm514, %v772
      %785 = vst.msk [vmem:[%s255 + $0x8] sm:$0xff] %vm514, %v773
      %786 = vst.msk [vmem:[%s255 + $0x10] sm:$0xff] %vm514, %v774
      %787 = vst.msk [vmem:[%s255 + $0x18] sm:$0xff] %vm514, %v775
      %788 = vst.msk [vmem:[%s255 + $0x20] sm:$0xff] %vm514, %v776
      %789 = vst.msk [vmem:[%s255 + $0x28] sm:$0xff] %vm514, %v777
      %790 = vst.msk [vmem:[%s255 + $0x30] sm:$0xff] %vm514, %v778
      %791 = vst.msk [vmem:[%s255 + $0x38] sm:$0xff] %vm514, %v779
      %792 = vst.msk [vmem:[%s255 + $0x40] sm:$0xff] %vm514, %v780
      %793 = vst.msk [vmem:[%s255 + $0x48] sm:$0xff] %vm514, %v781
      %794 = vst.msk [vmem:[%s255 + $0x50] sm:$0xff] %vm514, %v782
      %795 = vst.msk [vmem:[%s255 + $0x58] sm:$0xff] %vm514, %v783
      %p796 = scmp.lt.s32.totalorder %s20, 1
      %s797 = scalar_select %p796, %s20, 1
      %p798 = scmp.lt.s32.totalorder %s21, 0
      %s799 = scalar_select %p798, %s21, 0
      %s800 = smul.addr %s797, 12
      %s801 = sadd.s32 %s799, %s800
      %s802 = smul.addr %s801, 8
      %s803 = scalar_lea.vmem %s5, %s802
      // Predicated region
      $region41: #{tpu_custom_call.1} parent=39 // pred_check
        %p804 = pneg %p160
      $region42: #{tpu_custom_call.1} parent=39 // pred_check_branch
        %806 = sbr.rel (%p804) target = $region44
      $region43: #{tpu_custom_call.1} parent=39 // pred_region
        _
      $region44: #{tpu_custom_call.1} parent=39 // pred_fallthru
        _
    $region40: #{tpu_custom_call.1} parent=5 // pred_fallthru
      _
    %p807 = scmp.le.s32.totalorder 2, %s11
    // Predicated region
    $region45: #{tpu_custom_call.1} parent=5 // pred_check
      %p808 = pneg %p807
    $region46: #{tpu_custom_call.1} parent=5 // pred_check_branch
      %810 = sbr.rel (%p808) target = $region48
    $region47: #{tpu_custom_call.1} parent=5 // pred_region
      %s811 = ssub.s32 %s11, 2
      // Predicated region
      $region49: #{tpu_custom_call.1} parent=47 // pred_check
        %p812 = pneg %p166
      $region50: #{tpu_custom_call.1} parent=47 // pred_check_branch
        %814 = sbr.rel (%p812) target = $region52
      $region51: #{tpu_custom_call.1} parent=47 // pred_region
        %p815 = scmp.lt.s32.totalorder %s22, 1
        %s816 = scalar_select %p815, %s22, 1
        %p817 = scmp.lt.s32.totalorder %s23, 0
        %s818 = scalar_select %p817, %s23, 0
        %s819 = smul.addr %s816, 12
        %s820 = sadd.s32 %s818, %s819
        %s821 = smul.addr %s820, 8
        %s822 = scalar_lea.vmem %s5, %s821
      $region52: #{tpu_custom_call.1} parent=47 // pred_fallthru
        _
    $region48: #{tpu_custom_call.1} parent=5 // pred_fallthru
      _
  $region6: #{tpu_custom_call.1} parent=0 // loop_footer
    %s15 = sadd.s32 1, %s11
  $region7: #{tpu_custom_call.1} parent=0 // loop_footer_branch
    %10 = sbr.rel target = $region3
  $region8: #{tpu_custom_call.1} parent=0 // loop_exit
    _

// kernel: tpu_custom_call.1
$region0: #{tpu_custom_call.1}
  #allocation0 [shape = 'u32[]', space=smem, size = 0x4, offset = 0x4, fixed_abs, tag = 'smem constant byte address 0x4 - core index']
  #allocation1 [shape = 'u32[144,128]{1,0:T(1,128)}', space=vmem, size = 0x12000, scoped, tag = 'internal scratch']
  %s0 = inlined_call_operand.vmem [shape: f32[2,96,48], index: 0, kind: input, shape index: {}]
  %s1 = inlined_call_operand.vmem [shape: f32[96,96], index: 1, kind: input, shape index: {}]
  %s2 = inlined_call_operand.vmem [shape: f32[96,1], index: 2, kind: input, shape index: {}]
  %s3 = inlined_call_operand.vmem [shape: f32[96,1], index: 3, kind: input, shape index: {}]
  %s4 = inlined_call_operand.vmem [shape: f32[96,1], index: 4, kind: input, shape index: {}]
  %s5 = inlined_call_operand.vmem [shape: f32[2,96,48], index: 5, kind: output, shape index: {}]
  %s6 = sld [smem:[#allocation0]]
  $region53: #{tpu_custom_call.1} parent=0
    _
  %s8 = ssub.s32 1, %s6
  %s9 = scalar_select 0, %s8, %s6
  loop: start=0, step=1, limit=4
  $region2: #{tpu_custom_call.1} parent=0 // loop_pre_header
    _
  $region3: #{tpu_custom_call.1} parent=0 // loop_header
    %s11 = sphi 0, %s15
    %p12 = scmp.ge.s32.totalorder %s11, 4
    %s18 = sphi 0, %s30
    %s19 = sphi 0, %s26
    %s20 = sphi 0, %s18
    %s21 = sphi 0, %s19
    %s22 = sphi 0, %s20
    %s23 = sphi 0, %s21
    %s35 = sphi 0, %s37
    %s38 = sphi 0, %s35
    %s39 = sphi 0, %s38
    %s55 = sphi 0, %s39
    %s59 = sphi 0, %s59
    %s61 = sphi 0, %s59
    %s62 = sphi 0, %s61
    %s76 = sphi 0, %s62
    %s80 = sphi 0, %s80
    %s82 = sphi 0, %s80
    %s83 = sphi 0, %s82
    %s97 = sphi 0, %s83
    %s101 = sphi 0, %s101
    %s103 = sphi 0, %s101
    %s104 = sphi 0, %s103
    %s118 = sphi 0, %s104
    %s122 = sphi 0, %s122
    %s124 = sphi 0, %s122
    %s125 = sphi 0, %s124
    %s139 = sphi 0, %s125
    %s147 = sphi 0, %s149
    %s150 = sphi 0, %s147
    %s151 = sphi 0, %s150
    %s167 = sphi 0, %s151
  $region4: #{tpu_custom_call.1} parent=0 // loop_header_branch
    %14 = sbr.rel (%p12) target = $region8
  $region5: #{tpu_custom_call.1} parent=0 // loop_body
    %s16 = ssub.s32 %s11, 1
    %s17 = ssub.s32 %s11, 2
    %s24 = sadd.s32 1, %s19
    %p25 = scmp.ge.s32.totalorder %s24, 1
    %s26 = scalar_select %p25, 0, %s24
    %s27 = sadd.s32 1, %s18
    %s28 = scalar_select %p25, %s27, %s18
    %p29 = scmp.ge.s32.totalorder %s28, 2
    %s30 = scalar_select %p29, 0, %s28
    %s31 = ssub.s32 %s18, %s30
    %s32 = ssub.s32 %s19, %s26
    %s33 = sor.u32 %s31, %s32
    %p34 = scmp.eq.s32.totalorder %s33, 0
    %s36 = sadd.s32 %s35, 1
    %s37 = scalar_select %p34, %s35, %s36
    %p40 = pneg %p34
    %p41 = scmp.eq.s32.totalorder %s11, 1
    %p42 = por %p40, %p41
    %p43 = scmp.ne.s32.totalorder %s35, %s38
    %p44 = scmp.eq.s32.totalorder %s11, 0
    %p45 = por %p43, %p44
    %p46 = scmp.ne.s32.totalorder %s35, %s38
    %p47 = scmp.eq.s32.totalorder %s16, 1
    %p48 = por %p46, %p47
    %p49 = scmp.ne.s32.totalorder %s38, %s39
    %p50 = scmp.eq.s32.totalorder %s16, 0
    %p51 = por %p49, %p50
    %p52 = scmp.ne.s32.totalorder %s38, %s39
    %p53 = scmp.eq.s32.totalorder %s17, 1
    %p54 = por %p52, %p53
    %p56 = scmp.ne.s32.totalorder %s39, %s55
    %p57 = scmp.eq.s32.totalorder %s17, 0
    %p58 = por %p56, %p57
    %s60 = sadd.s32 %s59, 1
    %p63 = scmp.eq.s32.totalorder %s11, 1
    %p64 = scmp.ne.s32.totalorder %s59, %s61
    %p65 = scmp.eq.s32.totalorder %s11, 0
    %p66 = por %p64, %p65
    %p67 = scmp.ne.s32.totalorder %s59, %s61
    %p68 = scmp.eq.s32.totalorder %s16, 1
    %p69 = por %p67, %p68
    %p70 = scmp.ne.s32.totalorder %s61, %s62
    %p71 = scmp.eq.s32.totalorder %s16, 0
    %p72 = por %p70, %p71
    %p73 = scmp.ne.s32.totalorder %s61, %s62
    %p74 = scmp.eq.s32.totalorder %s17, 1
    %p75 = por %p73, %p74
    %p77 = scmp.ne.s32.totalorder %s62, %s76
    %p78 = scmp.eq.s32.totalorder %s17, 0
    %p79 = por %p77, %p78
    %s81 = sadd.s32 %s80, 1
    %p84 = scmp.eq.s32.totalorder %s11, 1
    %p85 = scmp.ne.s32.totalorder %s80, %s82
    %p86 = scmp.eq.s32.totalorder %s11, 0
    %p87 = por %p85, %p86
    %p88 = scmp.ne.s32.totalorder %s80, %s82
    %p89 = scmp.eq.s32.totalorder %s16, 1
    %p90 = por %p88, %p89
    %p91 = scmp.ne.s32.totalorder %s82, %s83
    %p92 = scmp.eq.s32.totalorder %s16, 0
    %p93 = por %p91, %p92
    %p94 = scmp.ne.s32.totalorder %s82, %s83
    %p95 = scmp.eq.s32.totalorder %s17, 1
    %p96 = por %p94, %p95
    %p98 = scmp.ne.s32.totalorder %s83, %s97
    %p99 = scmp.eq.s32.totalorder %s17, 0
    %p100 = por %p98, %p99
    %s102 = sadd.s32 %s101, 1
    %p105 = scmp.eq.s32.totalorder %s11, 1
    %p106 = scmp.ne.s32.totalorder %s101, %s103
    %p107 = scmp.eq.s32.totalorder %s11, 0
    %p108 = por %p106, %p107
    %p109 = scmp.ne.s32.totalorder %s101, %s103
    %p110 = scmp.eq.s32.totalorder %s16, 1
    %p111 = por %p109, %p110
    %p112 = scmp.ne.s32.totalorder %s103, %s104
    %p113 = scmp.eq.s32.totalorder %s16, 0
    %p114 = por %p112, %p113
    %p115 = scmp.ne.s32.totalorder %s103, %s104
    %p116 = scmp.eq.s32.totalorder %s17, 1
    %p117 = por %p115, %p116
    %p119 = scmp.ne.s32.totalorder %s104, %s118
    %p120 = scmp.eq.s32.totalorder %s17, 0
    %p121 = por %p119, %p120
    %s123 = sadd.s32 %s122, 1
    %p126 = scmp.eq.s32.totalorder %s11, 1
    %p127 = scmp.ne.s32.totalorder %s122, %s124
    %p128 = scmp.eq.s32.totalorder %s11, 0
    %p129 = por %p127, %p128
    %p130 = scmp.ne.s32.totalorder %s122, %s124
    %p131 = scmp.eq.s32.totalorder %s16, 1
    %p132 = por %p130, %p131
    %p133 = scmp.ne.s32.totalorder %s124, %s125
    %p134 = scmp.eq.s32.totalorder %s16, 0
    %p135 = por %p133, %p134
    %p136 = scmp.ne.s32.totalorder %s124, %s125
    %p137 = scmp.eq.s32.totalorder %s17, 1
    %p138 = por %p136, %p137
    %p140 = scmp.ne.s32.totalorder %s125, %s139
    %p141 = scmp.eq.s32.totalorder %s17, 0
    %p142 = por %p140, %p141
    %s143 = ssub.s32 %s18, %s30
    %s144 = ssub.s32 %s19, %s26
    %s145 = sor.u32 %s143, %s144
    %p146 = scmp.eq.s32.totalorder %s145, 0
    %s148 = sadd.s32 %s147, 1
    %s149 = scalar_select %p146, %s147, %s148
    %p152 = pneg %p146
    %p153 = scmp.eq.s32.totalorder %s11, 1
    %p154 = por %p152, %p153
    %p155 = scmp.ne.s32.totalorder %s147, %s150
    %p156 = scmp.eq.s32.totalorder %s11, 0
    %p157 = por %p155, %p156
    %p158 = scmp.ne.s32.totalorder %s147, %s150
    %p159 = scmp.eq.s32.totalorder %s16, 1
    %p160 = por %p158, %p159
    %p161 = scmp.ne.s32.totalorder %s150, %s151
    %p162 = scmp.eq.s32.totalorder %s16, 0
    %p163 = por %p161, %p162
    %p164 = scmp.ne.s32.totalorder %s150, %s151
    %p165 = scmp.eq.s32.totalorder %s17, 1
    %p166 = por %p164, %p165
    %p168 = scmp.ne.s32.totalorder %s151, %s167
    %p169 = scmp.eq.s32.totalorder %s17, 0
    %p170 = por %p168, %p169
    %p171 = scmp.le.s32.totalorder 1, %s11
    %p172 = scmp.lt.s32.totalorder %s11, 3
    %p173 = pnand %p171, %p172
    %p174 = pneg %p173
    // Predicated region
    $region9: #{tpu_custom_call.1} parent=5 // pred_check
      _
    $region10: #{tpu_custom_call.1} parent=5 // pred_check_branch
      %176 = sbr.rel (%p173) target = $region12
    $region11: #{tpu_custom_call.1} parent=5 // pred_region
      %s177 = ssub.s32 %s11, 1
      // Predicated region
      $region13: #{tpu_custom_call.1} parent=11 // pred_check
        %p178 = pneg %p72
      $region14: #{tpu_custom_call.1} parent=11 // pred_check_branch
        %180 = sbr.rel (%p178) target = $region16
      $region15: #{tpu_custom_call.1} parent=11 // pred_region
        _
      $region16: #{tpu_custom_call.1} parent=11 // pred_fallthru
        _
      // Predicated region
      $region17: #{tpu_custom_call.1} parent=11 // pred_check
        %p181 = pneg %p93
      $region18: #{tpu_custom_call.1} parent=11 // pred_check_branch
        %183 = sbr.rel (%p181) target = $region20
      $region19: #{tpu_custom_call.1} parent=11 // pred_region
        _
      $region20: #{tpu_custom_call.1} parent=11 // pred_fallthru
        _
      // Predicated region
      $region21: #{tpu_custom_call.1} parent=11 // pred_check
        %p184 = pneg %p114
      $region22: #{tpu_custom_call.1} parent=11 // pred_check_branch
        %186 = sbr.rel (%p184) target = $region24
      $region23: #{tpu_custom_call.1} parent=11 // pred_region
        _
      $region24: #{tpu_custom_call.1} parent=11 // pred_fallthru
        _
      // Predicated region
      $region25: #{tpu_custom_call.1} parent=11 // pred_check
        %p187 = pneg %p135
      $region26: #{tpu_custom_call.1} parent=11 // pred_check_branch
        %189 = sbr.rel (%p187) target = $region28
      $region27: #{tpu_custom_call.1} parent=11 // pred_region
        _
      $region28: #{tpu_custom_call.1} parent=11 // pred_fallthru
        _
    $region12: #{tpu_custom_call.1} parent=5 // pred_fallthru
      _
    %p190 = scmp.lt.s32.totalorder %s11, 2
    // Predicated region
    $region29: #{tpu_custom_call.1} parent=5 // pred_check
      %p191 = pneg %p190
    $region30: #{tpu_custom_call.1} parent=5 // pred_check_branch
      %193 = sbr.rel (%p191) target = $region32
    $region31: #{tpu_custom_call.1} parent=5 // pred_region
      // Predicated region
      $region33: #{tpu_custom_call.1} parent=31 // pred_check
        %p194 = pneg %p45
      $region34: #{tpu_custom_call.1} parent=31 // pred_check_branch
        %196 = sbr.rel (%p194) target = $region36
      $region35: #{tpu_custom_call.1} parent=31 // pred_region
        %p197 = scmp.lt.s32.totalorder %s18, 1
        %s198 = scalar_select %p197, %s18, 1
        %p199 = scmp.lt.s32.totalorder %s19, 0
        %s200 = scalar_select %p199, %s19, 0
        %s201 = smul.addr %s198, 12
        %s202 = sadd.s32 %s200, %s201
        %s203 = smul.addr %s202, 8
        %s204 = scalar_lea.vmem %s0, %s203
      $region36: #{tpu_custom_call.1} parent=31 // pred_fallthru
        _
    $region32: #{tpu_custom_call.1} parent=5 // pred_fallthru
      _
    %p205 = scmp.le.s32.totalorder 1, %s11
    %p206 = scmp.lt.s32.totalorder %s11, 3
    %p207 = pnand %p205, %p206
    %p208 = pneg %p207
    // Predicated region
    $region37: #{tpu_custom_call.1} parent=5 // pred_check
      _
    $region38: #{tpu_custom_call.1} parent=5 // pred_check_branch
      %210 = sbr.rel (%p207) target = $region40
    $region39: #{tpu_custom_call.1} parent=5 // pred_region
      %s211 = ssub.s32 %s11, 1
      %p212 = scmp.lt.s32.totalorder %s20, 1
      %s213 = scalar_select %p212, %s20, 1
      %p214 = scmp.lt.s32.totalorder %s21, 0
      %s215 = scalar_select %p214, %s21, 0
      %s216 = smul.addr %s213, 12
      %s217 = sadd.s32 %s215, %s216
      %s218 = smul.addr %s217, 8
      %s219 = scalar_lea.vmem %s0, %s218
      %p220 = pneg %p51
      %p221 = pneg %p48
      %p222 = pneg %p72
      %p223 = pneg %p69
      %p224 = pneg %p93
      %p225 = pneg %p90
      %p226 = pneg %p114
      %p227 = pneg %p111
      %p228 = pneg %p135
      %p229 = pneg %p132
      %p230 = pneg %p163
      %p231 = pneg %p160
      %p232 = scmp.lt.s32.totalorder %s20, 1
      %s233 = scalar_select %p232, %s20, 1
      %p234 = scmp.lt.s32.totalorder %s21, 0
      %s235 = scalar_select %p234, %s21, 0
      %s236 = smul.addr %s233, 12
      %s237 = sadd.s32 %s235, %s236
      %s238 = smul.addr %s237, 8
      %s239 = scalar_lea.vmem %s5, %s238
      %p240 = scmp.lt.s32.totalorder %s20, 1
      %s241 = scalar_select %p240, %s20, 1
      %p242 = scmp.lt.s32.totalorder %s21, 0
      %s243 = scalar_select %p242, %s21, 0
      %s244 = smul.addr %s241, 12
      %s245 = sadd.s32 %s243, %s244
      %s246 = smul.addr %s245, 8
      %s247 = scalar_lea.vmem %s0, %s246
      %p248 = scmp.lt.s32.totalorder %s20, 1
      %s249 = scalar_select %p248, %s20, 1
      %p250 = scmp.lt.s32.totalorder %s21, 0
      %s251 = scalar_select %p250, %s21, 0
      %s252 = smul.addr %s249, 12
      %s253 = sadd.s32 %s251, %s252
      %s254 = smul.addr %s253, 8
      %s255 = scalar_lea.vmem %s5, %s254
      %v256 = vld [vmem:[%s1] sm:$0xff]
      %v257 = vld [vmem:[%s1 + $0x8] sm:$0xff]
      %v258 = vld [vmem:[%s1 + $0x10] sm:$0xff]
      %v259 = vld [vmem:[%s1 + $0x18] sm:$0xff]
      %v260 = vld [vmem:[%s1 + $0x20] sm:$0xff]
      %v261 = vld [vmem:[%s1 + $0x28] sm:$0xff]
      %v262 = vld [vmem:[%s1 + $0x30] sm:$0xff]
      %v263 = vld [vmem:[%s1 + $0x38] sm:$0xff]
      %v264 = vld [vmem:[%s1 + $0x40] sm:$0xff]
      %v265 = vld [vmem:[%s1 + $0x48] sm:$0xff]
      %v266 = vld [vmem:[%s1 + $0x50] sm:$0xff]
      %v267 = vld [vmem:[%s1 + $0x58] sm:$0xff]
      %v268 = vld [vmem:[%s247] sm:$0xff]
      %v269 = vld [vmem:[%s247 + $0x8] sm:$0xff]
      %v270 = vld [vmem:[%s247 + $0x10] sm:$0xff]
      %v271 = vld [vmem:[%s247 + $0x18] sm:$0xff]
      %v272 = vld [vmem:[%s247 + $0x20] sm:$0xff]
      %v273 = vld [vmem:[%s247 + $0x28] sm:$0xff]
      %v274 = vld [vmem:[%s247 + $0x30] sm:$0xff]
      %v275 = vld [vmem:[%s247 + $0x38] sm:$0xff]
      %v276 = vld [vmem:[%s247 + $0x40] sm:$0xff]
      %v277 = vld [vmem:[%s247 + $0x48] sm:$0xff]
      %v278 = vld [vmem:[%s247 + $0x50] sm:$0xff]
      %v279 = vld [vmem:[%s247 + $0x58] sm:$0xff]
      %v280 = vld [vmem:[%s2] sm:$0xff]
      %v281 = vld [vmem:[%s2 + $0x8] sm:$0xff]
      %v282 = vld [vmem:[%s2 + $0x10] sm:$0xff]
      %v283 = vld [vmem:[%s2 + $0x18] sm:$0xff]
      %v284 = vld [vmem:[%s2 + $0x20] sm:$0xff]
      %v285 = vld [vmem:[%s2 + $0x28] sm:$0xff]
      %v286 = vld [vmem:[%s2 + $0x30] sm:$0xff]
      %v287 = vld [vmem:[%s2 + $0x38] sm:$0xff]
      %v288 = vld [vmem:[%s2 + $0x40] sm:$0xff]
      %v289 = vld [vmem:[%s2 + $0x48] sm:$0xff]
      %v290 = vld [vmem:[%s2 + $0x50] sm:$0xff]
      %v291 = vld [vmem:[%s2 + $0x58] sm:$0xff]
      %293 = vset.pattern.permute.xlu0 0
      %294 = vperm.xlu0 %293, %v280
      %v295 = vpop.permute.xlu0 %294
      %298 = vset.pattern.permute.xlu0 0
      %299 = vperm.xlu0 %298, %v281
      %v300 = vpop.permute.xlu0 %299
      %303 = vset.pattern.permute.xlu0 0
      %304 = vperm.xlu0 %303, %v282
      %v305 = vpop.permute.xlu0 %304
      %308 = vset.pattern.permute.xlu0 0
      %309 = vperm.xlu0 %308, %v283
      %v310 = vpop.permute.xlu0 %309
      %313 = vset.pattern.permute.xlu0 0
      %314 = vperm.xlu0 %313, %v284
      %v315 = vpop.permute.xlu0 %314
      %318 = vset.pattern.permute.xlu0 0
      %319 = vperm.xlu0 %318, %v285
      %v320 = vpop.permute.xlu0 %319
      %323 = vset.pattern.permute.xlu0 0
      %324 = vperm.xlu0 %323, %v286
      %v325 = vpop.permute.xlu0 %324
      %328 = vset.pattern.permute.xlu0 0
      %329 = vperm.xlu0 %328, %v287
      %v330 = vpop.permute.xlu0 %329
      %333 = vset.pattern.permute.xlu0 0
      %334 = vperm.xlu0 %333, %v288
      %v335 = vpop.permute.xlu0 %334
      %338 = vset.pattern.permute.xlu0 0
      %339 = vperm.xlu0 %338, %v289
      %v340 = vpop.permute.xlu0 %339
      %343 = vset.pattern.permute.xlu0 0
      %344 = vperm.xlu0 %343, %v290
      %v345 = vpop.permute.xlu0 %344
      %348 = vset.pattern.permute.xlu0 0
      %349 = vperm.xlu0 %348, %v291
      %v350 = vpop.permute.xlu0 %349
      %vm352 = vcmask 785408
      %v354 = vsel %vm352, %v256, 0
      %v357 = vsel %vm352, %v257, 0
      %v360 = vsel %vm352, %v258, 0
      %v363 = vsel %vm352, %v259, 0
      %v366 = vsel %vm352, %v260, 0
      %v369 = vsel %vm352, %v261, 0
      %v372 = vsel %vm352, %v262, 0
      %v375 = vsel %vm352, %v263, 0
      %v378 = vsel %vm352, %v264, 0
      %v381 = vsel %vm352, %v265, 0
      %v384 = vsel %vm352, %v266, 0
      %v387 = vsel %vm352, %v267, 0
      %389 = vmatprep.subr.mxu0 0.0
      %390 = vmatpush1.msra.mxu0 %v268
      %391 = vmatprep.subr.mxu0 0.0
      %392 = vmatpush1.msra.mxu0 %v269
      %393 = vmatprep.subr.mxu0 0.0
      %394 = vmatpush1.msra.mxu0 %v270
      %395 = vmatprep.subr.mxu0 0.0
      %396 = vmatpush1.msra.mxu0 %v271
      %397 = vmatprep.subr.mxu0 0.0
      %398 = vmatpush1.msra.mxu0 %v272
      %399 = vmatprep.subr.mxu0 0.0
      %400 = vmatpush1.msra.mxu0 %v273
      %401 = vmatprep.subr.mxu0 0.0
      %402 = vmatpush1.msra.mxu0 %v274
      %403 = vmatprep.subr.mxu0 0.0
      %404 = vmatpush1.msra.mxu0 %v275
      %405 = vmatprep.subr.mxu0 0.0
      %406 = vmatpush1.msra.mxu0 %v276
      %407 = vmatprep.subr.mxu0 0.0
      %408 = vmatpush1.msra.mxu0 %v277
      %409 = vmatprep.subr.mxu0 0.0
      %410 = vmatpush1.msra.mxu0 %v278
      %411 = vmatprep.subr.mxu0 0.0
      %412 = vmatpush1.msra.mxu0 %v279
      %413 = vmatprep.subr.mxu0 0.0
      %414 = vmatpush1.msra.mxu0 0.0
      %415 = vmatprep.subr.mxu0 0.0
      %416 = vmatpush1.msra.mxu0 0.0
      %417 = vmatprep.subr.mxu0 0.0
      %418 = vmatpush1.msra.mxu0 0.0
      %419 = vmatprep.subr.mxu0 0.0
      %420 = vmatpush1.msra.mxu0 0.0
      %421 = vmatprep.subr.mxu0 0.0
      %422 = vmatpush1.msra.mxu0 0.0
      %423 = vmatprep.subr.mxu0 0.0
      %424 = vmatpush1.msra.mxu0 0.0
      %425 = vmatprep.subr.mxu0 0.0
      %426 = vmatpush1.msra.mxu0 0.0
      %427 = vmatprep.subr.mxu0 0.0
      %428 = vmatpush1.msra.mxu0 0.0
      %429 = vmatprep.subr.mxu0 0.0
      %430 = vmatpush1.msra.mxu0 0.0
      %431 = vmatprep.subr.mxu0 0.0
      %432 = vmatpush1.msra.mxu0 0.0
      %433 = vmatprep.subr.mxu0 0.0
      %434 = vmatpush1.msra.mxu0 0.0
      %435 = vmatprep.subr.mxu0 0.0
      %436 = vmatpush1.msra.mxu0 0.0
      %437 = vmatprep.subr.mxu0 0.0
      %438 = vmatpush1.msra.mxu0 0.0
      %439 = vmatprep.subr.mxu0 0.0
      %440 = vmatpush1.msra.mxu0 0.0
      %441 = vmatprep.subr.mxu0 0.0
      %442 = vmatpush1.msra.mxu0 0.0
      %443 = vmatprep.subr.mxu0 0.0
      %444 = vmatpush1.msra.mxu0 0.0
      %445 = vmatprep.subr.mxu0 0.0
      %446 = vmatpush1.msra.mxu0 0.0
      %447 = vmatprep.subr.mxu0 0.0
      %448 = vmatpush1.msra.mxu0 0.0
      %449 = vmatprep.subr.mxu0 0.0
      %450 = vmatpush1.msra.mxu0 0.0
      %451 = vmatprep.subr.mxu0 0.0
      %452 = vmatpush1.msra.mxu0 0.0
      %453 = vmatprep.mubr.f32.mxu0 0.0
      %454 = vmatmul.mubr.f32.gmra.mrb[0].mxu0 %v354
      %v455 = vpop.f32.mrb[0].mxu0
      %v456 = vadd.f32 %v295, %v455
      %v457 = vpop.f32.mrb[0].mxu0
      %458 = vmatprep.mubr.f32.mxu0 0.0
      %459 = vmatmul.mubr.f32.gmra.mrb[0].mxu0 %v357
      %v460 = vpop.f32.mrb[0].mxu0
      %v461 = vadd.f32 %v300, %v460
      %v462 = vpop.f32.mrb[0].mxu0
      %463 = vmatprep.mubr.f32.mxu0 0.0
      %464 = vmatmul.mubr.f32.gmra.mrb[0].mxu0 %v360
      %v465 = vpop.f32.mrb[0].mxu0
      %v466 = vadd.f32 %v305, %v465
      %v467 = vpop.f32.mrb[0].mxu0
      %468 = vmatprep.mubr.f32.mxu0 0.0
      %469 = vmatmul.mubr.f32.gmra.mrb[0].mxu0 %v363
      %v470 = vpop.f32.mrb[0].mxu0
      %v471 = vadd.f32 %v310, %v470
      %v472 = vpop.f32.mrb[0].mxu0
      %473 = vmatprep.mubr.f32.mxu0 0.0
      %474 = vmatmul.mubr.f32.gmra.mrb[0].mxu0 %v366
      %v475 = vpop.f32.mrb[0].mxu0
      %v476 = vadd.f32 %v315, %v475
      %v477 = vpop.f32.mrb[0].mxu0
      %478 = vmatprep.mubr.f32.mxu0 0.0
      %479 = vmatmul.mubr.f32.gmra.mrb[0].mxu0 %v369
      %v480 = vpop.f32.mrb[0].mxu0
      %v481 = vadd.f32 %v320, %v480
      %v482 = vpop.f32.mrb[0].mxu0
      %483 = vmatprep.mubr.f32.mxu0 0.0
      %484 = vmatmul.mubr.f32.gmra.mrb[0].mxu0 %v372
      %v485 = vpop.f32.mrb[0].mxu0
      %v486 = vadd.f32 %v325, %v485
      %v487 = vpop.f32.mrb[0].mxu0
      %488 = vmatprep.mubr.f32.mxu0 0.0
      %489 = vmatmul.mubr.f32.gmra.mrb[0].mxu0 %v375
      %v490 = vpop.f32.mrb[0].mxu0
      %v491 = vadd.f32 %v330, %v490
      %v492 = vpop.f32.mrb[0].mxu0
      %493 = vmatprep.mubr.f32.mxu0 0.0
      %494 = vmatmul.mubr.f32.gmra.mrb[0].mxu0 %v378
      %v495 = vpop.f32.mrb[0].mxu0
      %v496 = vadd.f32 %v335, %v495
      %v497 = vpop.f32.mrb[0].mxu0
      %498 = vmatprep.mubr.f32.mxu0 0.0
      %499 = vmatmul.mubr.f32.gmra.mrb[0].mxu0 %v381
      %v500 = vpop.f32.mrb[0].mxu0
      %v501 = vadd.f32 %v340, %v500
      %v502 = vpop.f32.mrb[0].mxu0
      %503 = vmatprep.mubr.f32.mxu0 0.0
      %504 = vmatmul.mubr.f32.gmra.mrb[0].mxu0 %v384
      %v505 = vpop.f32.mrb[0].mxu0
      %v506 = vadd.f32 %v345, %v505
      %v507 = vpop.f32.mrb[0].mxu0
      %508 = vmatprep.mubr.f32.mxu0 0.0
      %509 = vmatmul.mubr.f32.gmra.mrb[0].mxu0 %v387
      %v510 = vpop.f32.mrb[0].mxu0
      %v511 = vadd.f32 %v350, %v510
      %v512 = vpop.f32.mrb[0].mxu0
      %513 = vdwg.mxu0
      %vm514 = vcmask 392192
      %v515 = vsel %vm514, %v456, 0.0
      %v516 = vsel %vm514, %v461, 0.0
      %v517 = vadd.f32 %v515, %v516
      %v518 = vsel %vm514, %v466, 0.0
      %v519 = vadd.f32 %v517, %v518
      %v520 = vsel %vm514, %v471, 0.0
      %v521 = vadd.f32 %v519, %v520
      %v522 = vsel %vm514, %v476, 0.0
      %v523 = vadd.f32 %v521, %v522
      %v524 = vsel %vm514, %v481, 0.0
      %v525 = vadd.f32 %v523, %v524
      %v526 = vsel %vm514, %v486, 0.0
      %v527 = vadd.f32 %v525, %v526
      %v528 = vsel %vm514, %v491, 0.0
      %v529 = vadd.f32 %v527, %v528
      %v530 = vsel %vm514, %v496, 0.0
      %v531 = vadd.f32 %v529, %v530
      %v532 = vsel %vm514, %v501, 0.0
      %v533 = vadd.f32 %v531, %v532
      %v534 = vsel %vm514, %v506, 0.0
      %v535 = vadd.f32 %v533, %v534
      %v536 = vsel %vm514, %v511, 0.0
      %v537 = vadd.f32 %v535, %v536
      %v538 = vrot.slane %v537, 4
      %v539 = vadd.f32 %v537, %v538
      %v540 = vrot.slane %v539, 2
      %v541 = vadd.f32 %v539, %v540
      %v542 = vrot.slane %v541, 1
      %v543 = vadd.f32 %v541, %v542
      %v544 = vmul.f32 %v456, %v456
      %v545 = vmul.f32 %v461, %v461
      %v546 = vmul.f32 %v466, %v466
      %v547 = vmul.f32 %v471, %v471
      %v548 = vmul.f32 %v476, %v476
      %v549 = vmul.f32 %v481, %v481
      %v550 = vmul.f32 %v486, %v486
      %v551 = vmul.f32 %v491, %v491
      %v552 = vmul.f32 %v496, %v496
      %v553 = vmul.f32 %v501, %v501
      %v554 = vmul.f32 %v506, %v506
      %v555 = vmul.f32 %v511, %v511
      %v556 = vsel %vm514, %v544, 0.0
      %v557 = vsel %vm514, %v545, 0.0
      %v558 = vadd.f32 %v556, %v557
      %v559 = vsel %vm514, %v546, 0.0
      %v560 = vadd.f32 %v558, %v559
      %v561 = vsel %vm514, %v547, 0.0
      %v562 = vadd.f32 %v560, %v561
      %v563 = vsel %vm514, %v548, 0.0
      %v564 = vadd.f32 %v562, %v563
      %v565 = vsel %vm514, %v549, 0.0
      %v566 = vadd.f32 %v564, %v565
      %v567 = vsel %vm514, %v550, 0.0
      %v568 = vadd.f32 %v566, %v567
      %v569 = vsel %vm514, %v551, 0.0
      %v570 = vadd.f32 %v568, %v569
      %v571 = vsel %vm514, %v552, 0.0
      %v572 = vadd.f32 %v570, %v571
      %v573 = vsel %vm514, %v553, 0.0
      %v574 = vadd.f32 %v572, %v573
      %v575 = vsel %vm514, %v554, 0.0
      %v576 = vadd.f32 %v574, %v575
      %v577 = vsel %vm514, %v555, 0.0
      %v578 = vadd.f32 %v576, %v577
      %v579 = vrot.slane %v578, 4
      %v580 = vadd.f32 %v578, %v579
      %v581 = vrot.slane %v580, 2
      %v582 = vadd.f32 %v580, %v581
      %v583 = vrot.slane %v582, 1
      %v584 = vadd.f32 %v582, %v583
      %v585 = vmul.f32 %v543, 0.010416667
      %v586 = vmul.f32 %v584, 0.010416667
      %v587 = vmul.f32 %v585, %v585
      %v588 = vsub.f32 %v586, %v587
      %v589 = vmax.f32 %v588, 0.0
      %v590 = vsub.f32 %v456, %v585
      %v591 = vsub.f32 %v461, %v585
      %v592 = vsub.f32 %v466, %v585
      %v593 = vsub.f32 %v471, %v585
      %v594 = vsub.f32 %v476, %v585
      %v595 = vsub.f32 %v481, %v585
      %v596 = vsub.f32 %v486, %v585
      %v597 = vsub.f32 %v491, %v585
      %v598 = vsub.f32 %v496, %v585
      %v599 = vsub.f32 %v501, %v585
      %v600 = vsub.f32 %v506, %v585
      %v601 = vsub.f32 %v511, %v585
      %v602 = vadd.f32 %v589, 1e-05
      %v603 = vrsqrt.pop %v602
      %v604 = vmul.f32 %v590, %v603
      %v605 = vmul.f32 %v591, %v603
      %v606 = vmul.f32 %v592, %v603
      %v607 = vmul.f32 %v593, %v603
      %v608 = vmul.f32 %v594, %v603
      %v609 = vmul.f32 %v595, %v603
      %v610 = vmul.f32 %v596, %v603
      %v611 = vmul.f32 %v597, %v603
      %v612 = vmul.f32 %v598, %v603
      %v613 = vmul.f32 %v599, %v603
      %v614 = vmul.f32 %v600, %v603
      %v615 = vmul.f32 %v601, %v603
      %v616 = vld [vmem:[%s3] sm:$0xff]
      %v617 = vld [vmem:[%s3 + $0x8] sm:$0xff]
      %v618 = vld [vmem:[%s3 + $0x10] sm:$0xff]
      %v619 = vld [vmem:[%s3 + $0x18] sm:$0xff]
      %v620 = vld [vmem:[%s3 + $0x20] sm:$0xff]
      %v621 = vld [vmem:[%s3 + $0x28] sm:$0xff]
      %v622 = vld [vmem:[%s3 + $0x30] sm:$0xff]
      %v623 = vld [vmem:[%s3 + $0x38] sm:$0xff]
      %v624 = vld [vmem:[%s3 + $0x40] sm:$0xff]
      %v625 = vld [vmem:[%s3 + $0x48] sm:$0xff]
      %v626 = vld [vmem:[%s3 + $0x50] sm:$0xff]
      %v627 = vld [vmem:[%s3 + $0x58] sm:$0xff]
      %629 = vset.pattern.permute.xlu0 0
      %630 = vperm.xlu0 %629, %v616
      %v631 = vpop.permute.xlu0 %630
      %634 = vset.pattern.permute.xlu0 0
      %635 = vperm.xlu0 %634, %v617
      %v636 = vpop.permute.xlu0 %635
      %639 = vset.pattern.permute.xlu0 0
      %640 = vperm.xlu0 %639, %v618
      %v641 = vpop.permute.xlu0 %640
      %644 = vset.pattern.permute.xlu0 0
      %645 = vperm.xlu0 %644, %v619
      %v646 = vpop.permute.xlu0 %645
      %649 = vset.pattern.permute.xlu0 0
      %650 = vperm.xlu0 %649, %v620
      %v651 = vpop.permute.xlu0 %650
      %654 = vset.pattern.permute.xlu0 0
      %655 = vperm.xlu0 %654, %v621
      %v656 = vpop.permute.xlu0 %655
      %659 = vset.pattern.permute.xlu0 0
      %660 = vperm.xlu0 %659, %v622
      %v661 = vpop.permute.xlu0 %660
      %664 = vset.pattern.permute.xlu0 0
      %665 = vperm.xlu0 %664, %v623
      %v666 = vpop.permute.xlu0 %665
      %669 = vset.pattern.permute.xlu0 0
      %670 = vperm.xlu0 %669, %v624
      %v671 = vpop.permute.xlu0 %670
      %674 = vset.pattern.permute.xlu0 0
      %675 = vperm.xlu0 %674, %v625
      %v676 = vpop.permute.xlu0 %675
      %679 = vset.pattern.permute.xlu0 0
      %680 = vperm.xlu0 %679, %v626
      %v681 = vpop.permute.xlu0 %680
      %684 = vset.pattern.permute.xlu0 0
      %685 = vperm.xlu0 %684, %v627
      %v686 = vpop.permute.xlu0 %685
      %v688 = vmul.f32 %v604, %v631
      %v689 = vmul.f32 %v605, %v636
      %v690 = vmul.f32 %v606, %v641
      %v691 = vmul.f32 %v607, %v646
      %v692 = vmul.f32 %v608, %v651
      %v693 = vmul.f32 %v609, %v656
      %v694 = vmul.f32 %v610, %v661
      %v695 = vmul.f32 %v611, %v666
      %v696 = vmul.f32 %v612, %v671
      %v697 = vmul.f32 %v613, %v676
      %v698 = vmul.f32 %v614, %v681
      %v699 = vmul.f32 %v615, %v686
      %v700 = vld [vmem:[%s4] sm:$0xff]
      %v701 = vld [vmem:[%s4 + $0x8] sm:$0xff]
      %v702 = vld [vmem:[%s4 + $0x10] sm:$0xff]
      %v703 = vld [vmem:[%s4 + $0x18] sm:$0xff]
      %v704 = vld [vmem:[%s4 + $0x20] sm:$0xff]
      %v705 = vld [vmem:[%s4 + $0x28] sm:$0xff]
      %v706 = vld [vmem:[%s4 + $0x30] sm:$0xff]
      %v707 = vld [vmem:[%s4 + $0x38] sm:$0xff]
      %v708 = vld [vmem:[%s4 + $0x40] sm:$0xff]
      %v709 = vld [vmem:[%s4 + $0x48] sm:$0xff]
      %v710 = vld [vmem:[%s4 + $0x50] sm:$0xff]
      %v711 = vld [vmem:[%s4 + $0x58] sm:$0xff]
      %713 = vset.pattern.permute.xlu0 0
      %714 = vperm.xlu0 %713, %v700
      %v715 = vpop.permute.xlu0 %714
      %718 = vset.pattern.permute.xlu0 0
      %719 = vperm.xlu0 %718, %v701
      %v720 = vpop.permute.xlu0 %719
      %723 = vset.pattern.permute.xlu0 0
      %724 = vperm.xlu0 %723, %v702
      %v725 = vpop.permute.xlu0 %724
      %728 = vset.pattern.permute.xlu0 0
      %729 = vperm.xlu0 %728, %v703
      %v730 = vpop.permute.xlu0 %729
      %733 = vset.pattern.permute.xlu0 0
      %734 = vperm.xlu0 %733, %v704
      %v735 = vpop.permute.xlu0 %734
      %738 = vset.pattern.permute.xlu0 0
      %739 = vperm.xlu0 %738, %v705
      %v740 = vpop.permute.xlu0 %739
      %743 = vset.pattern.permute.xlu0 0
      %744 = vperm.xlu0 %743, %v706
      %v745 = vpop.permute.xlu0 %744
      %748 = vset.pattern.permute.xlu0 0
      %749 = vperm.xlu0 %748, %v707
      %v750 = vpop.permute.xlu0 %749
      %753 = vset.pattern.permute.xlu0 0
      %754 = vperm.xlu0 %753, %v708
      %v755 = vpop.permute.xlu0 %754
      %758 = vset.pattern.permute.xlu0 0
      %759 = vperm.xlu0 %758, %v709
      %v760 = vpop.permute.xlu0 %759
      %763 = vset.pattern.permute.xlu0 0
      %764 = vperm.xlu0 %763, %v710
      %v765 = vpop.permute.xlu0 %764
      %768 = vset.pattern.permute.xlu0 0
      %769 = vperm.xlu0 %768, %v711
      %v770 = vpop.permute.xlu0 %769
      %v772 = vadd.f32 %v688, %v715
      %v773 = vadd.f32 %v689, %v720
      %v774 = vadd.f32 %v690, %v725
      %v775 = vadd.f32 %v691, %v730
      %v776 = vadd.f32 %v692, %v735
      %v777 = vadd.f32 %v693, %v740
      %v778 = vadd.f32 %v694, %v745
      %v779 = vadd.f32 %v695, %v750
      %v780 = vadd.f32 %v696, %v755
      %v781 = vadd.f32 %v697, %v760
      %v782 = vadd.f32 %v698, %v765
      %v783 = vadd.f32 %v699, %v770
      %784 = vst.msk [vmem:[%s255] sm:$0xff] %vm514, %v772
      %785 = vst.msk [vmem:[%s255 + $0x8] sm:$0xff] %vm514, %v773
      %786 = vst.msk [vmem:[%s255 + $0x10] sm:$0xff] %vm514, %v774
      %787 = vst.msk [vmem:[%s255 + $0x18] sm:$0xff] %vm514, %v775
      %788 = vst.msk [vmem:[%s255 + $0x20] sm:$0xff] %vm514, %v776
      %789 = vst.msk [vmem:[%s255 + $0x28] sm:$0xff] %vm514, %v777
      %790 = vst.msk [vmem:[%s255 + $0x30] sm:$0xff] %vm514, %v778
      %791 = vst.msk [vmem:[%s255 + $0x38] sm:$0xff] %vm514, %v779
      %792 = vst.msk [vmem:[%s255 + $0x40] sm:$0xff] %vm514, %v780
      %793 = vst.msk [vmem:[%s255 + $0x48] sm:$0xff] %vm514, %v781
      %794 = vst.msk [vmem:[%s255 + $0x50] sm:$0xff] %vm514, %v782
      %795 = vst.msk [vmem:[%s255 + $0x58] sm:$0xff] %vm514, %v783
      %p796 = scmp.lt.s32.totalorder %s20, 1
      %s797 = scalar_select %p796, %s20, 1
      %p798 = scmp.lt.s32.totalorder %s21, 0
      %s799 = scalar_select %p798, %s21, 0
      %s800 = smul.addr %s797, 12
      %s801 = sadd.s32 %s799, %s800
      %s802 = smul.addr %s801, 8
      %s803 = scalar_lea.vmem %s5, %s802
      // Predicated region
      $region41: #{tpu_custom_call.1} parent=39 // pred_check
        %p804 = pneg %p160
      $region42: #{tpu_custom_call.1} parent=39 // pred_check_branch
        %806 = sbr.rel (%p804) target = $region44
      $region43: #{tpu_custom_call.1} parent=39 // pred_region
        _
      $region44: #{tpu_custom_call.1} parent=39 // pred_fallthru
        _
    $region40: #{tpu_custom_call.1} parent=5 // pred_fallthru
      _
    %p807 = scmp.le.s32.totalorder 2, %s11
    // Predicated region
    $region45: #{tpu_custom_call.1} parent=5 // pred_check
      %p808 = pneg %p807
    $region46: #{tpu_custom_call.1} parent=5 // pred_check_branch
      %810 = sbr.rel (%p808) target = $region48
    $region47: #{tpu_custom_call.1} parent=5 // pred_region
      %s811 = ssub.s32 %s11, 2
      // Predicated region
      $region49: #{tpu_custom_call.1} parent=47 // pred_check
        %p812 = pneg %p166
      $region50: #{tpu_custom_call.1} parent=47 // pred_check_branch
        %814 = sbr.rel (%p812) target = $region52
      $region51: #{tpu_custom_call.1} parent=47 // pred_region
        %p815 = scmp.lt.s32.totalorder %s22, 1
        %s816 = scalar_select %p815, %s22, 1
        %p817 = scmp.lt.s32.totalorder %s23, 0
        %s818 = scalar_select %p817, %s23, 0
        %s819 = smul.addr %s816, 12
        %s820 = sadd.s32 %s818, %s819
        %s821 = smul.addr %s820, 8
        %s822 = scalar_lea.vmem %s5, %s821
      $region52: #{tpu_custom_call.1} parent=47 // pred_fallthru
        _
    $region48: #{tpu_custom_call.1} parent=5 // pred_fallthru
      _
  $region6: #{tpu_custom_call.1} parent=0 // loop_footer
    %s15 = sadd.s32 1, %s11
  $region7: #{tpu_custom_call.1} parent=0 // loop_footer_branch
    %10 = sbr.rel target = $region3
  $region8: #{tpu_custom_call.1} parent=0 // loop_exit
    _

</llo_original>
